<compile_context>
chip_gen: v7x
topology: tpu7x:2x2x1
jax: 0.10.0
libtpu: 0.0.40
codegen_flags: <defaults>
</compile_context>

<pallas_src>
import jax
import jax.numpy as jnp
from jax import lax
from jax.experimental import pallas as pl
from jax.experimental.pallas import tpu as pltpu


def _attn_kernel(q_ref, k_ref, v_ref, o_ref, m_sc, l_sc, acc_sc):
    n_idx = pl.program_id(1)

    @pl.when(n_idx == 0)
    def _():
        m_sc[...] = jnp.full_like(m_sc, -jnp.inf)
        l_sc[...] = jnp.zeros_like(l_sc)
        acc_sc[...] = jnp.zeros_like(acc_sc)

    # Fold the 1/2048 scale into q (touches M*K instead of M*N); bf16 for MXU,
    # f32 accumulation everywhere.
    q = (q_ref[...] * (1.0 / 2048.0)).astype(jnp.bfloat16)      # (Bb, M, K)
    k = k_ref[...].astype(jnp.bfloat16)                         # (Bb, tn, K)
    v = v_ref[...].astype(jnp.bfloat16)                         # (Bb, tn, D)

    # Batched contraction over K directly (no transpose of k).
    s = lax.dot_general(
        q, k,
        dimension_numbers=(((2,), (2,)), ((0,), (0,))),
        preferred_element_type=jnp.float32)                     # (Bb, M, tn)

    m_prev = m_sc[...]
    m_new = jnp.maximum(m_prev, jnp.max(s, axis=-1, keepdims=True))
    alpha = jnp.exp(m_prev - m_new)                             # 0 on first tile
    p = jnp.exp(s - m_new)                                      # unnormalized probs

    l_sc[...] = alpha * l_sc[...] + jnp.sum(p, axis=-1, keepdims=True)
    pv = lax.dot_general(
        p.astype(jnp.bfloat16), v,
        dimension_numbers=(((2,), (1,)), ((0,), (0,))),
        preferred_element_type=jnp.float32)                     # (Bb, M, D)
    acc_sc[...] = alpha * acc_sc[...] + pv
    m_sc[...] = m_new

    # TODO(synk): nn.Dropout(p=0.1) is identity in eval mode; training-mode torch RNG
    # dropout is not reproduced here.

    @pl.when(n_idx == pl.num_programs(1) - 1)
    def _():
        inv_l = pl.reciprocal(l_sc[...], approx=True)
        o_ref[...] = (acc_sc[...] * inv_l).astype(o_ref.dtype)


def fused_attention(query, key, value, attn_mask=None, *, b_blk=None, tn=None):
    # attn_mask is accepted for signature parity but unused: the torch forward
    # never applies it.
    B, M, K = query.shape
    Bk, N, Kk = key.shape
    Bv, Nv, D = value.shape
    assert Bk == B and Bv == B and Kk == K and Nv == N

    if b_blk is None:
        b_blk = 1
        for cand in (8, 4, 2, 1):
            if B % cand == 0:
                b_blk = cand
                break
    if tn is None:
        tn = N
        for cand in (512, 256, 128):
            if N % cand == 0:
                tn = cand
                break
    assert B % b_blk == 0 and N % tn == 0

    grid = (B // b_blk, N // tn)   # reduction axis (N tiles) last

    return pl.pallas_call(
        _attn_kernel,
        out_shape=jax.ShapeDtypeStruct((B, M, D), jnp.float32),
        grid_spec=pltpu.PrefetchScalarGridSpec(
            num_scalar_prefetch=0,
            grid=grid,
            in_specs=[
                pl.BlockSpec((b_blk, M, K), lambda b, n: (b, 0, 0)),
                pl.BlockSpec((b_blk, tn, K), lambda b, n: (b, n, 0)),
                pl.BlockSpec((b_blk, tn, D), lambda b, n: (b, n, 0)),
            ],
            out_specs=pl.BlockSpec((b_blk, M, D), lambda b, n: (b, 0, 0)),
            scratch_shapes=[
                pltpu.VMEM((b_blk, M, 1), jnp.float32),   # running max
                pltpu.VMEM((b_blk, M, 1), jnp.float32),   # running sum
                pltpu.VMEM((b_blk, M, D), jnp.float32),   # unnormalized output acc
            ],
        ),
        compiler_params=pltpu.CompilerParams(
            dimension_semantics=("parallel", "arbitrary")),
    )(query, key, value)


def reference(query, key, value):
    s = jnp.einsum("bmk,bnk->bmn", query, key,
                   preferred_element_type=jnp.float32) / 2048.0
    p = jax.nn.softmax(s, axis=-1)
    return jnp.einsum("bmn,bnd->bmd", p, value)


if __name__ == "__main__":
    # Small shapes consistent with the module's batched attention
    # (torch spec uses B=128, M=4, N=1024, K=1024, D=512; scaled down but
    # keeping K/D/N lane-dense multiples of 128 and M=4).
    B, M, N, K, D = 8, 4, 256, 128, 128
    k0, k1, k2 = jax.random.split(jax.random.PRNGKey(0), 3)
    query = jax.random.normal(k0, (B, M, K), dtype=jnp.float32)
    key = jax.random.normal(k1, (B, N, K), dtype=jnp.float32)
    value = jax.random.normal(k2, (B, N, D), dtype=jnp.float32)
    attn_mask = jnp.zeros((B, M, N), dtype=jnp.float32)  # unused by the forward

    out = fused_attention(query, key, value, attn_mask)
    out = jax.block_until_ready(out)

    ref = reference(query, key, value)
    assert out.shape == (B, M, D)
    # bf16 matmul inputs + approx reciprocal -> loosened tolerance vs f32 reference.
    assert jnp.allclose(out, ref, atol=1e-2, rtol=1e-2)
    print("KERNEL_OK")
</pallas_src>

<mosaic_0001>
module attributes {stable_mosaic.version = 11 : i64} {
  func.func @_attn_kernel(%arg0: i32, %arg1: i32, %arg2: memref<8x4x128xf32, #tpu.memory_space<vmem>>, %arg3: memref<8x256x128xf32, #tpu.memory_space<vmem>>, %arg4: memref<8x256x128xf32, #tpu.memory_space<vmem>>, %arg5: memref<8x4x128xf32, #tpu.memory_space<vmem>>, %arg6: memref<8x4x1xf32, #tpu.memory_space<vmem>>, %arg7: memref<8x4x1xf32, #tpu.memory_space<vmem>>, %arg8: memref<8x4x128xf32, #tpu.memory_space<vmem>>) attributes {dimension_semantics = [#tpu.dimension_semantics<parallel>, #tpu.dimension_semantics<arbitrary>], iteration_bounds = array<i64: 1, 1>, scalar_prefetch = 0 : i64, scratch_operands = 3 : i64, tpu.core_type = #tpu.core_type<tc>, window_params = [{transform_indices = @transform_0, window_bounds = array<i64: 8, 4, 128>}, {transform_indices = @transform_1, window_bounds = array<i64: 8, 256, 128>}, {transform_indices = @transform_2, window_bounds = array<i64: 8, 256, 128>}, {transform_indices = @transform_3, window_bounds = array<i64: 8, 4, 128>}]} {
    %c0_i32 = arith.constant 0 : i32
    %0 = arith.cmpi eq, %arg1, %c0_i32 : i32
    %1 = arith.extui %0 : i1 to i32
    %c0_i32_0 = arith.constant 0 : i32
    %2 = arith.cmpi ne, %1, %c0_i32_0 : i32
    scf.if %2 {
      %cst_33 = arith.constant 0xFF800000 : f32
      %38 = vector.broadcast %cst_33 : f32 to vector<8x4x1xf32>
      %c0_34 = arith.constant 0 : index
      %c0_35 = arith.constant 0 : index
      %c0_36 = arith.constant 0 : index
      %39 = vector.load %arg6[%c0_34, %c0_35, %c0_36] : memref<8x4x1xf32, #tpu.memory_space<vmem>>, vector<8x4x1xf32>
      tpu.vector_store %arg6[%c0_34, %c0_35, %c0_36], %38 {strides = array<i32>} : memref<8x4x1xf32, #tpu.memory_space<vmem>>, vector<8x4x1xf32>,
      %cst_37 = arith.constant 0.000000e+00 : f32
      %40 = vector.broadcast %cst_37 : f32 to vector<8x4x1xf32>
      %c0_38 = arith.constant 0 : index
      %c0_39 = arith.constant 0 : index
      %c0_40 = arith.constant 0 : index
      %41 = vector.load %arg7[%c0_38, %c0_39, %c0_40] : memref<8x4x1xf32, #tpu.memory_space<vmem>>, vector<8x4x1xf32>
      tpu.vector_store %arg7[%c0_38, %c0_39, %c0_40], %40 {strides = array<i32>} : memref<8x4x1xf32, #tpu.memory_space<vmem>>, vector<8x4x1xf32>,
      %cst_41 = arith.constant 0.000000e+00 : f32
      %42 = vector.broadcast %cst_41 : f32 to vector<8x4x128xf32>
      %c0_42 = arith.constant 0 : index
      %c0_43 = arith.constant 0 : index
      %c0_44 = arith.constant 0 : index
      %43 = vector.load %arg8[%c0_42, %c0_43, %c0_44] : memref<8x4x128xf32, #tpu.memory_space<vmem>>, vector<8x4x128xf32>
      tpu.vector_store %arg8[%c0_42, %c0_43, %c0_44], %42 {strides = array<i32>} : memref<8x4x128xf32, #tpu.memory_space<vmem>>, vector<8x4x128xf32>,
    } else {
    }
    %c0 = arith.constant 0 : index
    %c0_1 = arith.constant 0 : index
    %c0_2 = arith.constant 0 : index
    %3 = vector.load %arg2[%c0, %c0_1, %c0_2] : memref<8x4x128xf32, #tpu.memory_space<vmem>>, vector<8x4x128xf32>
    %cst = arith.constant 4.8828125E-4 : f32
    %4 = vector.broadcast %cst : f32 to vector<8x4x128xf32>
    %5 = arith.mulf %3, %4 : vector<8x4x128xf32>
    %6 = arith.truncf %5 : vector<8x4x128xf32> to vector<8x4x128xbf16>
    %c0_3 = arith.constant 0 : index
    %c0_4 = arith.constant 0 : index
    %c0_5 = arith.constant 0 : index
    %7 = vector.load %arg3[%c0_3, %c0_4, %c0_5] : memref<8x256x128xf32, #tpu.memory_space<vmem>>, vector<8x256x128xf32>
    %8 = arith.truncf %7 : vector<8x256x128xf32> to vector<8x256x128xbf16>
    %c0_6 = arith.constant 0 : index
    %c0_7 = arith.constant 0 : index
    %c0_8 = arith.constant 0 : index
    %9 = vector.load %arg4[%c0_6, %c0_7, %c0_8] : memref<8x256x128xf32, #tpu.memory_space<vmem>>, vector<8x256x128xf32>
    %10 = arith.truncf %9 : vector<8x256x128xf32> to vector<8x256x128xbf16>
    %cst_9 = arith.constant dense<0.000000e+00> : vector<8x4x256xf32>
    %11 = tpu.matmul %6, %8, %cst_9 {dimension_numbers = #tpu.dot_dimension_numbers<[2], [2], [1], [1], [0, 0, 0, 1, 1, 1], [0], [0]>} : vector<8x4x128xbf16>, vector<8x256x128xbf16>, vector<8x4x256xf32> -> vector<8x4x256xf32>
    %c0_10 = arith.constant 0 : index
    %c0_11 = arith.constant 0 : index
    %c0_12 = arith.constant 0 : index
    %12 = vector.load %arg6[%c0_10, %c0_11, %c0_12] : memref<8x4x1xf32, #tpu.memory_space<vmem>>, vector<8x4x1xf32>
    %cst_13 = arith.constant dense<0xFF800000> : vector<8x4xf32>
    %13 = vector.multi_reduction <maximumf>, %11, %cst_13 [2] : vector<8x4x256xf32> to vector<8x4xf32>
    %14 = vector.shape_cast %13 : vector<8x4xf32> to vector<8x4x1xf32>
    %15 = arith.maximumf %12, %14 : vector<8x4x1xf32>
    %16 = arith.subf %12, %15 : vector<8x4x1xf32>
    %17 = math.exp %16 : vector<8x4x1xf32>
    %18 = vector.broadcast %15 : vector<8x4x1xf32> to vector<8x4x256xf32>
    %19 = arith.subf %11, %18 : vector<8x4x256xf32>
    %20 = math.exp %19 : vector<8x4x256xf32>
    %c0_14 = arith.constant 0 : index
    %c0_15 = arith.constant 0 : index
    %c0_16 = arith.constant 0 : index
    %21 = vector.load %arg7[%c0_14, %c0_15, %c0_16] : memref<8x4x1xf32, #tpu.memory_space<vmem>>, vector<8x4x1xf32>
    %22 = arith.mulf %17, %21 : vector<8x4x1xf32>
    %cst_17 = arith.constant dense<0.000000e+00> : vector<8x4xf32>
    %23 = vector.multi_reduction <add>, %20, %cst_17 [2] : vector<8x4x256xf32> to vector<8x4xf32>
    %24 = vector.shape_cast %23 : vector<8x4xf32> to vector<8x4x1xf32>
    %25 = arith.addf %22, %24 : vector<8x4x1xf32>
    %c0_18 = arith.constant 0 : index
    %c0_19 = arith.constant 0 : index
    %c0_20 = arith.constant 0 : index
    %26 = vector.load %arg7[%c0_18, %c0_19, %c0_20] : memref<8x4x1xf32, #tpu.memory_space<vmem>>, vector<8x4x1xf32>
    tpu.vector_store %arg7[%c0_18, %c0_19, %c0_20], %25 {strides = array<i32>} : memref<8x4x1xf32, #tpu.memory_space<vmem>>, vector<8x4x1xf32>,
    %27 = arith.truncf %20 : vector<8x4x256xf32> to vector<8x4x256xbf16>
    %cst_21 = arith.constant dense<0.000000e+00> : vector<8x4x128xf32>
    %28 = tpu.matmul %27, %10, %cst_21 {dimension_numbers = #tpu.dot_dimension_numbers<[2], [1], [1], [2], [0, 0, 0, 1, 1, 2], [0], [0]>} : vector<8x4x256xbf16>, vector<8x256x128xbf16>, vector<8x4x128xf32> -> vector<8x4x128xf32>
    %c0_22 = arith.constant 0 : index
    %c0_23 = arith.constant 0 : index
    %c0_24 = arith.constant 0 : index
    %29 = vector.load %arg8[%c0_22, %c0_23, %c0_24] : memref<8x4x128xf32, #tpu.memory_space<vmem>>, vector<8x4x128xf32>
    %30 = vector.broadcast %17 : vector<8x4x1xf32> to vector<8x4x128xf32>
    %31 = arith.mulf %30, %29 : vector<8x4x128xf32>
    %32 = arith.addf %31, %28 : vector<8x4x128xf32>
    %c0_25 = arith.constant 0 : index
    %c0_26 = arith.constant 0 : index
    %c0_27 = arith.constant 0 : index
    %33 = vector.load %arg8[%c0_25, %c0_26, %c0_27] : memref<8x4x128xf32, #tpu.memory_space<vmem>>, vector<8x4x128xf32>
    tpu.vector_store %arg8[%c0_25, %c0_26, %c0_27], %32 {strides = array<i32>} : memref<8x4x128xf32, #tpu.memory_space<vmem>>, vector<8x4x128xf32>,
    %c0_28 = arith.constant 0 : index
    %c0_29 = arith.constant 0 : index
    %c0_30 = arith.constant 0 : index
    %34 = vector.load %arg6[%c0_28, %c0_29, %c0_30] : memref<8x4x1xf32, #tpu.memory_space<vmem>>, vector<8x4x1xf32>
    tpu.vector_store %arg6[%c0_28, %c0_29, %c0_30], %15 {strides = array<i32>} : memref<8x4x1xf32, #tpu.memory_space<vmem>>, vector<8x4x1xf32>,
    %c0_i32_31 = arith.constant 0 : i32
    %35 = arith.cmpi eq, %arg1, %c0_i32_31 : i32
    %36 = arith.extui %35 : i1 to i32
    %c0_i32_32 = arith.constant 0 : i32
    %37 = arith.cmpi ne, %36, %c0_i32_32 : i32
    scf.if %37 {
      %c0_33 = arith.constant 0 : index
      %c0_34 = arith.constant 0 : index
      %c0_35 = arith.constant 0 : index
      %38 = vector.load %arg7[%c0_33, %c0_34, %c0_35] : memref<8x4x1xf32, #tpu.memory_space<vmem>>, vector<8x4x1xf32>
      %39 = tpu.reciprocal %38 {approx = true} : vector<8x4x1xf32> -> vector<8x4x1xf32>
      %c0_36 = arith.constant 0 : index
      %c0_37 = arith.constant 0 : index
      %c0_38 = arith.constant 0 : index
      %40 = vector.load %arg8[%c0_36, %c0_37, %c0_38] : memref<8x4x128xf32, #tpu.memory_space<vmem>>, vector<8x4x128xf32>
      %41 = vector.broadcast %39 : vector<8x4x1xf32> to vector<8x4x128xf32>
      %42 = arith.mulf %40, %41 : vector<8x4x128xf32>
      %c0_39 = arith.constant 0 : index
      %c0_40 = arith.constant 0 : index
      %c0_41 = arith.constant 0 : index
      %43 = vector.load %arg5[%c0_39, %c0_40, %c0_41] : memref<8x4x128xf32, #tpu.memory_space<vmem>>, vector<8x4x128xf32>
      tpu.vector_store %arg5[%c0_39, %c0_40, %c0_41], %42 {strides = array<i32>} : memref<8x4x128xf32, #tpu.memory_space<vmem>>, vector<8x4x128xf32>,
    } else {
    }
    return
  }
  func.func @transform_0(%arg0: i32, %arg1: i32) -> (i32, i32, i32) {
    %c0_i32 = arith.constant 0 : i32
    %c0_i32_0 = arith.constant 0 : i32
    %c0_i32_1 = arith.constant 0 : i32
    return %arg0, %c0_i32, %c0_i32_0 : i32, i32, i32
  }
  func.func @transform_1(%arg0: i32, %arg1: i32) -> (i32, i32, i32) {
    %c0_i32 = arith.constant 0 : i32
    %c0_i32_0 = arith.constant 0 : i32
    return %arg0, %arg1, %c0_i32 : i32, i32, i32
  }
  func.func @transform_2(%arg0: i32, %arg1: i32) -> (i32, i32, i32) {
    %c0_i32 = arith.constant 0 : i32
    %c0_i32_0 = arith.constant 0 : i32
    return %arg0, %arg1, %c0_i32 : i32, i32, i32
  }
  func.func @transform_3(%arg0: i32, %arg1: i32) -> (i32, i32, i32) {
    %c0_i32 = arith.constant 0 : i32
    %c0_i32_0 = arith.constant 0 : i32
    %c0_i32_1 = arith.constant 0 : i32
    return %arg0, %c0_i32, %c0_i32_0 : i32, i32, i32
  }
}

</mosaic_0001>

<llo_original>
// kernel: tpu_custom_call.1
$region0: #{tpu_custom_call.1}
  #allocation0 [shape = 'u32[]', space=smem, size = 0x4, offset = 0x4, fixed_abs, tag = 'smem constant byte address 0x4 - core index']
  #allocation1 [shape = 'u32[144,128]{1,0:T(1,128)}', space=vmem, size = 0x12000, scoped, tag = 'internal scratch']
  #allocation2 [shape = 'f32[8,4,1]{2,1,0:T(4,128)}', space=vmem, size = 0x4000, scoped, tag = 'scratch operand']
  #allocation3 [shape = 'f32[8,4,1]{2,1,0:T(4,128)}', space=vmem, size = 0x4000, scoped, tag = 'scratch operand']
  #allocation4 [shape = 'f32[8,4,128]{2,1,0:T(4,128)}', space=vmem, size = 0x4000, scoped, tag = 'scratch operand']
  %s0 = inlined_call_operand.hbm [shape: f32[8,4,128], index: 0, kind: input, shape index: {}]
  %s1 = inlined_call_operand.hbm [shape: f32[8,256,128], index: 1, kind: input, shape index: {}]
  %s2 = inlined_call_operand.hbm [shape: f32[8,256,128], index: 2, kind: input, shape index: {}]
  %s3 = inlined_call_operand.hbm [shape: f32[8,4,128], index: 3, kind: output, shape index: {}]
  %s4 = sld [smem:[#allocation0]]
  $region42: #{tpu_custom_call.1} parent=0
    _
  %s6 = ssub.s32 1, %s4
  %s7 = scalar_select 0, %s6, %s4
  $region1: #{tpu_custom_call.1} parent=0
    #allocation5 [shape = 'u8[16384]{0}', space=vmem, size = 0x4000, scoped, tag = 'input window, operand 0, single buffered']
    #allocation6 [shape = 's32[1]{0}', space=sflag, size = 0x4, scoped, tag = 'scoped memory for tpu_custom_call.1']
    #allocation7 [shape = 's32[1]{0}', space=sflag, size = 0x4, scoped, tag = 'scoped memory for tpu_custom_call.1']
    #allocation8 [shape = 'u8[1048576]{0}', space=vmem, size = 0x100000, scoped, tag = 'input window, operand 1, single buffered']
    #allocation9 [shape = 's32[1]{0}', space=sflag, size = 0x4, scoped, tag = 'scoped memory for tpu_custom_call.1']
    #allocation10 [shape = 'u8[1048576]{0}', space=vmem, size = 0x100000, scoped, tag = 'input window, operand 2, single buffered']
    #allocation11 [shape = 'u8[16384]{0}', space=vmem, size = 0x4000, scoped, tag = 'output window, operand 0, single buffered']
    %8 = vsyncpa [#allocation6], 0
    %9 = vsyncpa [#allocation9], 0
    %10 = vsyncpa [#allocation7], 0
    // Predicated region
    $region2: #{tpu_custom_call.1} parent=1 // pred_check
      _
    $region3: #{tpu_custom_call.1} parent=1 // pred_check_branch
      %12 = sbr.rel (0) target = $region5
    $region4: #{tpu_custom_call.1} parent=1 // pred_region
      %s14 = ssub.s32 512, 512
      %15 = vsyncadd [#allocation6], %s14
      %s16 = sshll.u32 [#allocation5], 4
      %s17 = int_to_ptr.vmem [resolvable:$true] %s16
      %22 = dma.hbm_to_vmem [thread:$0]  %s0, 512, %s17, [#allocation6], 64, 64, 4
    $region5: #{tpu_custom_call.1} parent=1 // pred_fallthru
      _
    // Predicated region
    $region6: #{tpu_custom_call.1} parent=1 // pred_check
      _
    $region7: #{tpu_custom_call.1} parent=1 // pred_check_branch
      %24 = sbr.rel (0) target = $region9
    $region8: #{tpu_custom_call.1} parent=1 // pred_region
      %s26 = ssub.s32 32768, 32768
      %27 = vsyncadd [#allocation9], %s26
      %s28 = sshll.u32 [#allocation8], 4
      %s29 = int_to_ptr.vmem [resolvable:$true] %s28
      %34 = dma.hbm_to_vmem [thread:$0]  %s1, 32768, %s29, [#allocation9], 128, 128, 8
    $region9: #{tpu_custom_call.1} parent=1 // pred_fallthru
      _
    // Predicated region
    $region10: #{tpu_custom_call.1} parent=1 // pred_check
      _
    $region11: #{tpu_custom_call.1} parent=1 // pred_check_branch
      %36 = sbr.rel (0) target = $region13
    $region12: #{tpu_custom_call.1} parent=1 // pred_region
      %s38 = ssub.s32 32768, 32768
      %39 = vsyncadd [#allocation9], %s38
      %s40 = sshll.u32 [#allocation10], 4
      %s41 = int_to_ptr.vmem [resolvable:$true] %s40
      %46 = dma.hbm_to_vmem [thread:$0]  %s2, 32768, %s41, [#allocation9], 128, 128, 8
    $region13: #{tpu_custom_call.1} parent=1 // pred_fallthru
      _
    // Predicated region
    $region14: #{tpu_custom_call.1} parent=1 // pred_check
      _
    $region15: #{tpu_custom_call.1} parent=1 // pred_check_branch
      %48 = sbr.rel (0) target = $region17
    $region16: #{tpu_custom_call.1} parent=1 // pred_region
      %49 = dma.done [#allocation6], 512
    $region17: #{tpu_custom_call.1} parent=1 // pred_fallthru
      _
    // Predicated region
    $region18: #{tpu_custom_call.1} parent=1 // pred_check
      _
    $region19: #{tpu_custom_call.1} parent=1 // pred_check_branch
      %51 = sbr.rel (0) target = $region21
    $region20: #{tpu_custom_call.1} parent=1 // pred_region
      %52 = dma.done [#allocation9], 32768
    $region21: #{tpu_custom_call.1} parent=1 // pred_fallthru
      _
    // Predicated region
    $region22: #{tpu_custom_call.1} parent=1 // pred_check
      _
    $region23: #{tpu_custom_call.1} parent=1 // pred_check_branch
      %54 = sbr.rel (0) target = $region25
    $region24: #{tpu_custom_call.1} parent=1 // pred_region
      %55 = dma.done [#allocation9], 32768
    $region25: #{tpu_custom_call.1} parent=1 // pred_fallthru
      _
    %p57 = scmp.eq.s32.totalorder 0, 0
    // Predicated region
    $region26: #{tpu_custom_call.1} parent=1 // pred_check
      %p58 = pneg %p57
    $region27: #{tpu_custom_call.1} parent=1 // pred_check_branch
      %60 = sbr.rel (%p58) target = $region29
    $region28: #{tpu_custom_call.1} parent=1 // pred_region
      %vm61 = vcmask 3072
      %62 = vst.msk [vmem:[#allocation2] sm:$0xf] %vm61, -inf
      %63 = vst.msk [vmem:[#allocation2 + $0x4] sm:$0xf] %vm61, -inf
      %64 = vst.msk [vmem:[#allocation2 + $0x8] sm:$0xf] %vm61, -inf
      %65 = vst.msk [vmem:[#allocation2 + $0xc] sm:$0xf] %vm61, -inf
      %66 = vst.msk [vmem:[#allocation2 + $0x10] sm:$0xf] %vm61, -inf
      %67 = vst.msk [vmem:[#allocation2 + $0x14] sm:$0xf] %vm61, -inf
      %68 = vst.msk [vmem:[#allocation2 + $0x18] sm:$0xf] %vm61, -inf
      %69 = vst.msk [vmem:[#allocation2 + $0x1c] sm:$0xf] %vm61, -inf
      %70 = vst.msk [vmem:[#allocation3] sm:$0xf] %vm61, 0.0
      %71 = vst.msk [vmem:[#allocation3 + $0x4] sm:$0xf] %vm61, 0.0
      %72 = vst.msk [vmem:[#allocation3 + $0x8] sm:$0xf] %vm61, 0.0
      %73 = vst.msk [vmem:[#allocation3 + $0xc] sm:$0xf] %vm61, 0.0
      %74 = vst.msk [vmem:[#allocation3 + $0x10] sm:$0xf] %vm61, 0.0
      %75 = vst.msk [vmem:[#allocation3 + $0x14] sm:$0xf] %vm61, 0.0
      %76 = vst.msk [vmem:[#allocation3 + $0x18] sm:$0xf] %vm61, 0.0
      %77 = vst.msk [vmem:[#allocation3 + $0x1c] sm:$0xf] %vm61, 0.0
      %78 = vst [vmem:[#allocation4] sm:$0xf] 0.0
      %79 = vst [vmem:[#allocation4 + $0x4] sm:$0xf] 0.0
      %80 = vst [vmem:[#allocation4 + $0x8] sm:$0xf] 0.0
      %81 = vst [vmem:[#allocation4 + $0xc] sm:$0xf] 0.0
      %82 = vst [vmem:[#allocation4 + $0x10] sm:$0xf] 0.0
      %83 = vst [vmem:[#allocation4 + $0x14] sm:$0xf] 0.0
      %84 = vst [vmem:[#allocation4 + $0x18] sm:$0xf] 0.0
      %85 = vst [vmem:[#allocation4 + $0x1c] sm:$0xf] 0.0
    $region29: #{tpu_custom_call.1} parent=1 // pred_fallthru
      _
    %v86 = vld [vmem:[#allocation5] sm:$0xf]
    %v87 = vld [vmem:[#allocation5 + $0x4] sm:$0xf]
    %v88 = vld [vmem:[#allocation5 + $0x8] sm:$0xf]
    %v89 = vld [vmem:[#allocation5 + $0xc] sm:$0xf]
    %v90 = vld [vmem:[#allocation5 + $0x10] sm:$0xf]
    %v91 = vld [vmem:[#allocation5 + $0x14] sm:$0xf]
    %v92 = vld [vmem:[#allocation5 + $0x18] sm:$0xf]
    %v93 = vld [vmem:[#allocation5 + $0x1c] sm:$0xf]
    %v94 = vmul.f32 %v86, 0.00048828125
    %v95 = vmul.f32 %v87, 0.00048828125
    %v96 = vmul.f32 %v88, 0.00048828125
    %v97 = vmul.f32 %v89, 0.00048828125
    %v98 = vmul.f32 %v90, 0.00048828125
    %v99 = vmul.f32 %v91, 0.00048828125
    %v100 = vmul.f32 %v92, 0.00048828125
    %v101 = vmul.f32 %v93, 0.00048828125
    %v102 = vpack.c.bf16 %v94, %v94
    %v103 = vpack.c.bf16 %v95, %v95
    %v104 = vpack.c.bf16 %v96, %v96
    %v105 = vpack.c.bf16 %v97, %v97
    %v106 = vpack.c.bf16 %v98, %v98
    %v107 = vpack.c.bf16 %v99, %v99
    %v108 = vpack.c.bf16 %v100, %v100
    %v109 = vpack.c.bf16 %v101, %v101
    %v110 = vld [vmem:[#allocation8] sm:$0xff]
    %v111 = vld [vmem:[#allocation8 + $0x8] sm:$0xff]
    %v112 = vld [vmem:[#allocation8 + $0x10] sm:$0xff]
    %v113 = vld [vmem:[#allocation8 + $0x18] sm:$0xff]
    %v114 = vld [vmem:[#allocation8 + $0x20] sm:$0xff]
    %v115 = vld [vmem:[#allocation8 + $0x28] sm:$0xff]
    %v116 = vld [vmem:[#allocation8 + $0x30] sm:$0xff]
    %v117 = vld [vmem:[#allocation8 + $0x38] sm:$0xff]
    %v118 = vld [vmem:[#allocation8 + $0x40] sm:$0xff]
    %v119 = vld [vmem:[#allocation8 + $0x48] sm:$0xff]
    %v120 = vld [vmem:[#allocation8 + $0x50] sm:$0xff]
    %v121 = vld [vmem:[#allocation8 + $0x58] sm:$0xff]
    %v122 = vld [vmem:[#allocation8 + $0x60] sm:$0xff]
    %v123 = vld [vmem:[#allocation8 + $0x68] sm:$0xff]
    %v124 = vld [vmem:[#allocation8 + $0x70] sm:$0xff]
    %v125 = vld [vmem:[#allocation8 + $0x78] sm:$0xff]
    %v126 = vld [vmem:[#allocation8 + $0x80] sm:$0xff]
    %v127 = vld [vmem:[#allocation8 + $0x88] sm:$0xff]
    %v128 = vld [vmem:[#allocation8 + $0x90] sm:$0xff]
    %v129 = vld [vmem:[#allocation8 + $0x98] sm:$0xff]
    %v130 = vld [vmem:[#allocation8 + $0xa0] sm:$0xff]
    %v131 = vld [vmem:[#allocation8 + $0xa8] sm:$0xff]
    %v132 = vld [vmem:[#allocation8 + $0xb0] sm:$0xff]
    %v133 = vld [vmem:[#allocation8 + $0xb8] sm:$0xff]
    %v134 = vld [vmem:[#allocation8 + $0xc0] sm:$0xff]
    %v135 = vld [vmem:[#allocation8 + $0xc8] sm:$0xff]
    %v136 = vld [vmem:[#allocation8 + $0xd0] sm:$0xff]
    %v137 = vld [vmem:[#allocation8 + $0xd8] sm:$0xff]
    %v138 = vld [vmem:[#allocation8 + $0xe0] sm:$0xff]
    %v139 = vld [vmem:[#allocation8 + $0xe8] sm:$0xff]
    %v140 = vld [vmem:[#allocation8 + $0xf0] sm:$0xff]
    %v141 = vld [vmem:[#allocation8 + $0xf8] sm:$0xff]
    %v142 = vld [vmem:[#allocation8 + $0x100] sm:$0xff]
    %v143 = vld [vmem:[#allocation8 + $0x108] sm:$0xff]
    %v144 = vld [vmem:[#allocation8 + $0x110] sm:$0xff]
    %v145 = vld [vmem:[#allocation8 + $0x118] sm:$0xff]
    %v146 = vld [vmem:[#allocation8 + $0x120] sm:$0xff]
    %v147 = vld [vmem:[#allocation8 + $0x128] sm:$0xff]
    %v148 = vld [vmem:[#allocation8 + $0x130] sm:$0xff]
    %v149 = vld [vmem:[#allocation8 + $0x138] sm:$0xff]
    %v150 = vld [vmem:[#allocation8 + $0x140] sm:$0xff]
    %v151 = vld [vmem:[#allocation8 + $0x148] sm:$0xff]
    %v152 = vld [vmem:[#allocation8 + $0x150] sm:$0xff]
    %v153 = vld [vmem:[#allocation8 + $0x158] sm:$0xff]
    %v154 = vld [vmem:[#allocation8 + $0x160] sm:$0xff]
    %v155 = vld [vmem:[#allocation8 + $0x168] sm:$0xff]
    %v156 = vld [vmem:[#allocation8 + $0x170] sm:$0xff]
    %v157 = vld [vmem:[#allocation8 + $0x178] sm:$0xff]
    %v158 = vld [vmem:[#allocation8 + $0x180] sm:$0xff]
    %v159 = vld [vmem:[#allocation8 + $0x188] sm:$0xff]
    %v160 = vld [vmem:[#allocation8 + $0x190] sm:$0xff]
    %v161 = vld [vmem:[#allocation8 + $0x198] sm:$0xff]
    %v162 = vld [vmem:[#allocation8 + $0x1a0] sm:$0xff]
    %v163 = vld [vmem:[#allocation8 + $0x1a8] sm:$0xff]
    %v164 = vld [vmem:[#allocation8 + $0x1b0] sm:$0xff]
    %v165 = vld [vmem:[#allocation8 + $0x1b8] sm:$0xff]
    %v166 = vld [vmem:[#allocation8 + $0x1c0] sm:$0xff]
    %v167 = vld [vmem:[#allocation8 + $0x1c8] sm:$0xff]
    %v168 = vld [vmem:[#allocation8 + $0x1d0] sm:$0xff]
    %v169 = vld [vmem:[#allocation8 + $0x1d8] sm:$0xff]
    %v170 = vld [vmem:[#allocation8 + $0x1e0] sm:$0xff]
    %v171 = vld [vmem:[#allocation8 + $0x1e8] sm:$0xff]
    %v172 = vld [vmem:[#allocation8 + $0x1f0] sm:$0xff]
    %v173 = vld [vmem:[#allocation8 + $0x1f8] sm:$0xff]
    %v174 = vld [vmem:[#allocation8 + $0x200] sm:$0xff]
    %v175 = vld [vmem:[#allocation8 + $0x208] sm:$0xff]
    %v176 = vld [vmem:[#allocation8 + $0x210] sm:$0xff]
    %v177 = vld [vmem:[#allocation8 + $0x218] sm:$0xff]
    %v178 = vld [vmem:[#allocation8 + $0x220] sm:$0xff]
    %v179 = vld [vmem:[#allocation8 + $0x228] sm:$0xff]
    %v180 = vld [vmem:[#allocation8 + $0x230] sm:$0xff]
    %v181 = vld [vmem:[#allocation8 + $0x238] sm:$0xff]
    %v182 = vld [vmem:[#allocation8 + $0x240] sm:$0xff]
    %v183 = vld [vmem:[#allocation8 + $0x248] sm:$0xff]
    %v184 = vld [vmem:[#allocation8 + $0x250] sm:$0xff]
    %v185 = vld [vmem:[#allocation8 + $0x258] sm:$0xff]
    %v186 = vld [vmem:[#allocation8 + $0x260] sm:$0xff]
    %v187 = vld [vmem:[#allocation8 + $0x268] sm:$0xff]
    %v188 = vld [vmem:[#allocation8 + $0x270] sm:$0xff]
    %v189 = vld [vmem:[#allocation8 + $0x278] sm:$0xff]
    %v190 = vld [vmem:[#allocation8 + $0x280] sm:$0xff]
    %v191 = vld [vmem:[#allocation8 + $0x288] sm:$0xff]
    %v192 = vld [vmem:[#allocation8 + $0x290] sm:$0xff]
    %v193 = vld [vmem:[#allocation8 + $0x298] sm:$0xff]
    %v194 = vld [vmem:[#allocation8 + $0x2a0] sm:$0xff]
    %v195 = vld [vmem:[#allocation8 + $0x2a8] sm:$0xff]
    %v196 = vld [vmem:[#allocation8 + $0x2b0] sm:$0xff]
    %v197 = vld [vmem:[#allocation8 + $0x2b8] sm:$0xff]
    %v198 = vld [vmem:[#allocation8 + $0x2c0] sm:$0xff]
    %v199 = vld [vmem:[#allocation8 + $0x2c8] sm:$0xff]
    %v200 = vld [vmem:[#allocation8 + $0x2d0] sm:$0xff]
    %v201 = vld [vmem:[#allocation8 + $0x2d8] sm:$0xff]
    %v202 = vld [vmem:[#allocation8 + $0x2e0] sm:$0xff]
    %v203 = vld [vmem:[#allocation8 + $0x2e8] sm:$0xff]
    %v204 = vld [vmem:[#allocation8 + $0x2f0] sm:$0xff]
    %v205 = vld [vmem:[#allocation8 + $0x2f8] sm:$0xff]
    %v206 = vld [vmem:[#allocation8 + $0x300] sm:$0xff]
    %v207 = vld [vmem:[#allocation8 + $0x308] sm:$0xff]
    %v208 = vld [vmem:[#allocation8 + $0x310] sm:$0xff]
    %v209 = vld [vmem:[#allocation8 + $0x318] sm:$0xff]
    %v210 = vld [vmem:[#allocation8 + $0x320] sm:$0xff]
    %v211 = vld [vmem:[#allocation8 + $0x328] sm:$0xff]
    %v212 = vld [vmem:[#allocation8 + $0x330] sm:$0xff]
    %v213 = vld [vmem:[#allocation8 + $0x338] sm:$0xff]
    %v214 = vld [vmem:[#allocation8 + $0x340] sm:$0xff]
    %v215 = vld [vmem:[#allocation8 + $0x348] sm:$0xff]
    %v216 = vld [vmem:[#allocation8 + $0x350] sm:$0xff]
    %v217 = vld [vmem:[#allocation8 + $0x358] sm:$0xff]
    %v218 = vld [vmem:[#allocation8 + $0x360] sm:$0xff]
    %v219 = vld [vmem:[#allocation8 + $0x368] sm:$0xff]
    %v220 = vld [vmem:[#allocation8 + $0x370] sm:$0xff]
    %v221 = vld [vmem:[#allocation8 + $0x378] sm:$0xff]
    %v222 = vld [vmem:[#allocation8 + $0x380] sm:$0xff]
    %v223 = vld [vmem:[#allocation8 + $0x388] sm:$0xff]
    %v224 = vld [vmem:[#allocation8 + $0x390] sm:$0xff]
    %v225 = vld [vmem:[#allocation8 + $0x398] sm:$0xff]
    %v226 = vld [vmem:[#allocation8 + $0x3a0] sm:$0xff]
    %v227 = vld [vmem:[#allocation8 + $0x3a8] sm:$0xff]
    %v228 = vld [vmem:[#allocation8 + $0x3b0] sm:$0xff]
    %v229 = vld [vmem:[#allocation8 + $0x3b8] sm:$0xff]
    %v230 = vld [vmem:[#allocation8 + $0x3c0] sm:$0xff]
    %v231 = vld [vmem:[#allocation8 + $0x3c8] sm:$0xff]
    %v232 = vld [vmem:[#allocation8 + $0x3d0] sm:$0xff]
    %v233 = vld [vmem:[#allocation8 + $0x3d8] sm:$0xff]
    %v234 = vld [vmem:[#allocation8 + $0x3e0] sm:$0xff]
    %v235 = vld [vmem:[#allocation8 + $0x3e8] sm:$0xff]
    %v236 = vld [vmem:[#allocation8 + $0x3f0] sm:$0xff]
    %v237 = vld [vmem:[#allocation8 + $0x3f8] sm:$0xff]
    %v238 = vld [vmem:[#allocation8 + $0x400] sm:$0xff]
    %v239 = vld [vmem:[#allocation8 + $0x408] sm:$0xff]
    %v240 = vld [vmem:[#allocation8 + $0x410] sm:$0xff]
    %v241 = vld [vmem:[#allocation8 + $0x418] sm:$0xff]
    %v242 = vld [vmem:[#allocation8 + $0x420] sm:$0xff]
    %v243 = vld [vmem:[#allocation8 + $0x428] sm:$0xff]
    %v244 = vld [vmem:[#allocation8 + $0x430] sm:$0xff]
    %v245 = vld [vmem:[#allocation8 + $0x438] sm:$0xff]
    %v246 = vld [vmem:[#allocation8 + $0x440] sm:$0xff]
    %v247 = vld [vmem:[#allocation8 + $0x448] sm:$0xff]
    %v248 = vld [vmem:[#allocation8 + $0x450] sm:$0xff]
    %v249 = vld [vmem:[#allocation8 + $0x458] sm:$0xff]
    %v250 = vld [vmem:[#allocation8 + $0x460] sm:$0xff]
    %v251 = vld [vmem:[#allocation8 + $0x468] sm:$0xff]
    %v252 = vld [vmem:[#allocation8 + $0x470] sm:$0xff]
    %v253 = vld [vmem:[#allocation8 + $0x478] sm:$0xff]
    %v254 = vld [vmem:[#allocation8 + $0x480] sm:$0xff]
    %v255 = vld [vmem:[#allocation8 + $0x488] sm:$0xff]
    %v256 = vld [vmem:[#allocation8 + $0x490] sm:$0xff]
    %v257 = vld [vmem:[#allocation8 + $0x498] sm:$0xff]
    %v258 = vld [vmem:[#allocation8 + $0x4a0] sm:$0xff]
    %v259 = vld [vmem:[#allocation8 + $0x4a8] sm:$0xff]
    %v260 = vld [vmem:[#allocation8 + $0x4b0] sm:$0xff]
    %v261 = vld [vmem:[#allocation8 + $0x4b8] sm:$0xff]
    %v262 = vld [vmem:[#allocation8 + $0x4c0] sm:$0xff]
    %v263 = vld [vmem:[#allocation8 + $0x4c8] sm:$0xff]
    %v264 = vld [vmem:[#allocation8 + $0x4d0] sm:$0xff]
    %v265 = vld [vmem:[#allocation8 + $0x4d8] sm:$0xff]
    %v266 = vld [vmem:[#allocation8 + $0x4e0] sm:$0xff]
    %v267 = vld [vmem:[#allocation8 + $0x4e8] sm:$0xff]
    %v268 = vld [vmem:[#allocation8 + $0x4f0] sm:$0xff]
    %v269 = vld [vmem:[#allocation8 + $0x4f8] sm:$0xff]
    %v270 = vld [vmem:[#allocation8 + $0x500] sm:$0xff]
    %v271 = vld [vmem:[#allocation8 + $0x508] sm:$0xff]
    %v272 = vld [vmem:[#allocation8 + $0x510] sm:$0xff]
    %v273 = vld [vmem:[#allocation8 + $0x518] sm:$0xff]
    %v274 = vld [vmem:[#allocation8 + $0x520] sm:$0xff]
    %v275 = vld [vmem:[#allocation8 + $0x528] sm:$0xff]
    %v276 = vld [vmem:[#allocation8 + $0x530] sm:$0xff]
    %v277 = vld [vmem:[#allocation8 + $0x538] sm:$0xff]
    %v278 = vld [vmem:[#allocation8 + $0x540] sm:$0xff]
    %v279 = vld [vmem:[#allocation8 + $0x548] sm:$0xff]
    %v280 = vld [vmem:[#allocation8 + $0x550] sm:$0xff]
    %v281 = vld [vmem:[#allocation8 + $0x558] sm:$0xff]
    %v282 = vld [vmem:[#allocation8 + $0x560] sm:$0xff]
    %v283 = vld [vmem:[#allocation8 + $0x568] sm:$0xff]
    %v284 = vld [vmem:[#allocation8 + $0x570] sm:$0xff]
    %v285 = vld [vmem:[#allocation8 + $0x578] sm:$0xff]
    %v286 = vld [vmem:[#allocation8 + $0x580] sm:$0xff]
    %v287 = vld [vmem:[#allocation8 + $0x588] sm:$0xff]
    %v288 = vld [vmem:[#allocation8 + $0x590] sm:$0xff]
    %v289 = vld [vmem:[#allocation8 + $0x598] sm:$0xff]
    %v290 = vld [vmem:[#allocation8 + $0x5a0] sm:$0xff]
    %v291 = vld [vmem:[#allocation8 + $0x5a8] sm:$0xff]
    %v292 = vld [vmem:[#allocation8 + $0x5b0] sm:$0xff]
    %v293 = vld [vmem:[#allocation8 + $0x5b8] sm:$0xff]
    %v294 = vld [vmem:[#allocation8 + $0x5c0] sm:$0xff]
    %v295 = vld [vmem:[#allocation8 + $0x5c8] sm:$0xff]
    %v296 = vld [vmem:[#allocation8 + $0x5d0] sm:$0xff]
    %v297 = vld [vmem:[#allocation8 + $0x5d8] sm:$0xff]
    %v298 = vld [vmem:[#allocation8 + $0x5e0] sm:$0xff]
    %v299 = vld [vmem:[#allocation8 + $0x5e8] sm:$0xff]
    %v300 = vld [vmem:[#allocation8 + $0x5f0] sm:$0xff]
    %v301 = vld [vmem:[#allocation8 + $0x5f8] sm:$0xff]
    %v302 = vld [vmem:[#allocation8 + $0x600] sm:$0xff]
    %v303 = vld [vmem:[#allocation8 + $0x608] sm:$0xff]
    %v304 = vld [vmem:[#allocation8 + $0x610] sm:$0xff]
    %v305 = vld [vmem:[#allocation8 + $0x618] sm:$0xff]
    %v306 = vld [vmem:[#allocation8 + $0x620] sm:$0xff]
    %v307 = vld [vmem:[#allocation8 + $0x628] sm:$0xff]
    %v308 = vld [vmem:[#allocation8 + $0x630] sm:$0xff]
    %v309 = vld [vmem:[#allocation8 + $0x638] sm:$0xff]
    %v310 = vld [vmem:[#allocation8 + $0x640] sm:$0xff]
    %v311 = vld [vmem:[#allocation8 + $0x648] sm:$0xff]
    %v312 = vld [vmem:[#allocation8 + $0x650] sm:$0xff]
    %v313 = vld [vmem:[#allocation8 + $0x658] sm:$0xff]
    %v314 = vld [vmem:[#allocation8 + $0x660] sm:$0xff]
    %v315 = vld [vmem:[#allocation8 + $0x668] sm:$0xff]
    %v316 = vld [vmem:[#allocation8 + $0x670] sm:$0xff]
    %v317 = vld [vmem:[#allocation8 + $0x678] sm:$0xff]
    %v318 = vld [vmem:[#allocation8 + $0x680] sm:$0xff]
    %v319 = vld [vmem:[#allocation8 + $0x688] sm:$0xff]
    %v320 = vld [vmem:[#allocation8 + $0x690] sm:$0xff]
    %v321 = vld [vmem:[#allocation8 + $0x698] sm:$0xff]
    %v322 = vld [vmem:[#allocation8 + $0x6a0] sm:$0xff]
    %v323 = vld [vmem:[#allocation8 + $0x6a8] sm:$0xff]
    %v324 = vld [vmem:[#allocation8 + $0x6b0] sm:$0xff]
    %v325 = vld [vmem:[#allocation8 + $0x6b8] sm:$0xff]
    %v326 = vld [vmem:[#allocation8 + $0x6c0] sm:$0xff]
    %v327 = vld [vmem:[#allocation8 + $0x6c8] sm:$0xff]
    %v328 = vld [vmem:[#allocation8 + $0x6d0] sm:$0xff]
    %v329 = vld [vmem:[#allocation8 + $0x6d8] sm:$0xff]
    %v330 = vld [vmem:[#allocation8 + $0x6e0] sm:$0xff]
    %v331 = vld [vmem:[#allocation8 + $0x6e8] sm:$0xff]
    %v332 = vld [vmem:[#allocation8 + $0x6f0] sm:$0xff]
    %v333 = vld [vmem:[#allocation8 + $0x6f8] sm:$0xff]
    %v334 = vld [vmem:[#allocation8 + $0x700] sm:$0xff]
    %v335 = vld [vmem:[#allocation8 + $0x708] sm:$0xff]
    %v336 = vld [vmem:[#allocation8 + $0x710] sm:$0xff]
    %v337 = vld [vmem:[#allocation8 + $0x718] sm:$0xff]
    %v338 = vld [vmem:[#allocation8 + $0x720] sm:$0xff]
    %v339 = vld [vmem:[#allocation8 + $0x728] sm:$0xff]
    %v340 = vld [vmem:[#allocation8 + $0x730] sm:$0xff]
    %v341 = vld [vmem:[#allocation8 + $0x738] sm:$0xff]
    %v342 = vld [vmem:[#allocation8 + $0x740] sm:$0xff]
    %v343 = vld [vmem:[#allocation8 + $0x748] sm:$0xff]
    %v344 = vld [vmem:[#allocation8 + $0x750] sm:$0xff]
    %v345 = vld [vmem:[#allocation8 + $0x758] sm:$0xff]
    %v346 = vld [vmem:[#allocation8 + $0x760] sm:$0xff]
    %v347 = vld [vmem:[#allocation8 + $0x768] sm:$0xff]
    %v348 = vld [vmem:[#allocation8 + $0x770] sm:$0xff]
    %v349 = vld [vmem:[#allocation8 + $0x778] sm:$0xff]
    %v350 = vld [vmem:[#allocation8 + $0x780] sm:$0xff]
    %v351 = vld [vmem:[#allocation8 + $0x788] sm:$0xff]
    %v352 = vld [vmem:[#allocation8 + $0x790] sm:$0xff]
    %v353 = vld [vmem:[#allocation8 + $0x798] sm:$0xff]
    %v354 = vld [vmem:[#allocation8 + $0x7a0] sm:$0xff]
    %v355 = vld [vmem:[#allocation8 + $0x7a8] sm:$0xff]
    %v356 = vld [vmem:[#allocation8 + $0x7b0] sm:$0xff]
    %v357 = vld [vmem:[#allocation8 + $0x7b8] sm:$0xff]
    %v358 = vld [vmem:[#allocation8 + $0x7c0] sm:$0xff]
    %v359 = vld [vmem:[#allocation8 + $0x7c8] sm:$0xff]
    %v360 = vld [vmem:[#allocation8 + $0x7d0] sm:$0xff]
    %v361 = vld [vmem:[#allocation8 + $0x7d8] sm:$0xff]
    %v362 = vld [vmem:[#allocation8 + $0x7e0] sm:$0xff]
    %v363 = vld [vmem:[#allocation8 + $0x7e8] sm:$0xff]
    %v364 = vld [vmem:[#allocation8 + $0x7f0] sm:$0xff]
    %v365 = vld [vmem:[#allocation8 + $0x7f8] sm:$0xff]
    %v366 = vpack.c.bf16 %v111, %v110
    %v367 = vpack.c.bf16 %v113, %v112
    %v368 = vpack.c.bf16 %v115, %v114
    %v369 = vpack.c.bf16 %v117, %v116
    %v370 = vpack.c.bf16 %v119, %v118
    %v371 = vpack.c.bf16 %v121, %v120
    %v372 = vpack.c.bf16 %v123, %v122
    %v373 = vpack.c.bf16 %v125, %v124
    %v374 = vpack.c.bf16 %v127, %v126
    %v375 = vpack.c.bf16 %v129, %v128
    %v376 = vpack.c.bf16 %v131, %v130
    %v377 = vpack.c.bf16 %v133, %v132
    %v378 = vpack.c.bf16 %v135, %v134
    %v379 = vpack.c.bf16 %v137, %v136
    %v380 = vpack.c.bf16 %v139, %v138
    %v381 = vpack.c.bf16 %v141, %v140
    %v382 = vpack.c.bf16 %v143, %v142
    %v383 = vpack.c.bf16 %v145, %v144
    %v384 = vpack.c.bf16 %v147, %v146
    %v385 = vpack.c.bf16 %v149, %v148
    %v386 = vpack.c.bf16 %v151, %v150
    %v387 = vpack.c.bf16 %v153, %v152
    %v388 = vpack.c.bf16 %v155, %v154
    %v389 = vpack.c.bf16 %v157, %v156
    %v390 = vpack.c.bf16 %v159, %v158
    %v391 = vpack.c.bf16 %v161, %v160
    %v392 = vpack.c.bf16 %v163, %v162
    %v393 = vpack.c.bf16 %v165, %v164
    %v394 = vpack.c.bf16 %v167, %v166
    %v395 = vpack.c.bf16 %v169, %v168
    %v396 = vpack.c.bf16 %v171, %v170
    %v397 = vpack.c.bf16 %v173, %v172
    %v398 = vpack.c.bf16 %v175, %v174
    %v399 = vpack.c.bf16 %v177, %v176
    %v400 = vpack.c.bf16 %v179, %v178
    %v401 = vpack.c.bf16 %v181, %v180
    %v402 = vpack.c.bf16 %v183, %v182
    %v403 = vpack.c.bf16 %v185, %v184
    %v404 = vpack.c.bf16 %v187, %v186
    %v405 = vpack.c.bf16 %v189, %v188
    %v406 = vpack.c.bf16 %v191, %v190
    %v407 = vpack.c.bf16 %v193, %v192
    %v408 = vpack.c.bf16 %v195, %v194
    %v409 = vpack.c.bf16 %v197, %v196
    %v410 = vpack.c.bf16 %v199, %v198
    %v411 = vpack.c.bf16 %v201, %v200
    %v412 = vpack.c.bf16 %v203, %v202
    %v413 = vpack.c.bf16 %v205, %v204
    %v414 = vpack.c.bf16 %v207, %v206
    %v415 = vpack.c.bf16 %v209, %v208
    %v416 = vpack.c.bf16 %v211, %v210
    %v417 = vpack.c.bf16 %v213, %v212
    %v418 = vpack.c.bf16 %v215, %v214
    %v419 = vpack.c.bf16 %v217, %v216
    %v420 = vpack.c.bf16 %v219, %v218
    %v421 = vpack.c.bf16 %v221, %v220
    %v422 = vpack.c.bf16 %v223, %v222
    %v423 = vpack.c.bf16 %v225, %v224
    %v424 = vpack.c.bf16 %v227, %v226
    %v425 = vpack.c.bf16 %v229, %v228
    %v426 = vpack.c.bf16 %v231, %v230
    %v427 = vpack.c.bf16 %v233, %v232
    %v428 = vpack.c.bf16 %v235, %v234
    %v429 = vpack.c.bf16 %v237, %v236
    %v430 = vpack.c.bf16 %v239, %v238
    %v431 = vpack.c.bf16 %v241, %v240
    %v432 = vpack.c.bf16 %v243, %v242
    %v433 = vpack.c.bf16 %v245, %v244
    %v434 = vpack.c.bf16 %v247, %v246
    %v435 = vpack.c.bf16 %v249, %v248
    %v436 = vpack.c.bf16 %v251, %v250
    %v437 = vpack.c.bf16 %v253, %v252
    %v438 = vpack.c.bf16 %v255, %v254
    %v439 = vpack.c.bf16 %v257, %v256
    %v440 = vpack.c.bf16 %v259, %v258
    %v441 = vpack.c.bf16 %v261, %v260
    %v442 = vpack.c.bf16 %v263, %v262
    %v443 = vpack.c.bf16 %v265, %v264
    %v444 = vpack.c.bf16 %v267, %v266
    %v445 = vpack.c.bf16 %v269, %v268
    %v446 = vpack.c.bf16 %v271, %v270
    %v447 = vpack.c.bf16 %v273, %v272
    %v448 = vpack.c.bf16 %v275, %v274
    %v449 = vpack.c.bf16 %v277, %v276
    %v450 = vpack.c.bf16 %v279, %v278
    %v451 = vpack.c.bf16 %v281, %v280
    %v452 = vpack.c.bf16 %v283, %v282
    %v453 = vpack.c.bf16 %v285, %v284
    %v454 = vpack.c.bf16 %v287, %v286
    %v455 = vpack.c.bf16 %v289, %v288
    %v456 = vpack.c.bf16 %v291, %v290
    %v457 = vpack.c.bf16 %v293, %v292
    %v458 = vpack.c.bf16 %v295, %v294
    %v459 = vpack.c.bf16 %v297, %v296
    %v460 = vpack.c.bf16 %v299, %v298
    %v461 = vpack.c.bf16 %v301, %v300
    %v462 = vpack.c.bf16 %v303, %v302
    %v463 = vpack.c.bf16 %v305, %v304
    %v464 = vpack.c.bf16 %v307, %v306
    %v465 = vpack.c.bf16 %v309, %v308
    %v466 = vpack.c.bf16 %v311, %v310
    %v467 = vpack.c.bf16 %v313, %v312
    %v468 = vpack.c.bf16 %v315, %v314
    %v469 = vpack.c.bf16 %v317, %v316
    %v470 = vpack.c.bf16 %v319, %v318
    %v471 = vpack.c.bf16 %v321, %v320
    %v472 = vpack.c.bf16 %v323, %v322
    %v473 = vpack.c.bf16 %v325, %v324
    %v474 = vpack.c.bf16 %v327, %v326
    %v475 = vpack.c.bf16 %v329, %v328
    %v476 = vpack.c.bf16 %v331, %v330
    %v477 = vpack.c.bf16 %v333, %v332
    %v478 = vpack.c.bf16 %v335, %v334
    %v479 = vpack.c.bf16 %v337, %v336
    %v480 = vpack.c.bf16 %v339, %v338
    %v481 = vpack.c.bf16 %v341, %v340
    %v482 = vpack.c.bf16 %v343, %v342
    %v483 = vpack.c.bf16 %v345, %v344
    %v484 = vpack.c.bf16 %v347, %v346
    %v485 = vpack.c.bf16 %v349, %v348
    %v486 = vpack.c.bf16 %v351, %v350
    %v487 = vpack.c.bf16 %v353, %v352
    %v488 = vpack.c.bf16 %v355, %v354
    %v489 = vpack.c.bf16 %v357, %v356
    %v490 = vpack.c.bf16 %v359, %v358
    %v491 = vpack.c.bf16 %v361, %v360
    %v492 = vpack.c.bf16 %v363, %v362
    %v493 = vpack.c.bf16 %v365, %v364
    %v494 = vld [vmem:[#allocation10] sm:$0xff]
    %v495 = vld [vmem:[#allocation10 + $0x8] sm:$0xff]
    %v496 = vld [vmem:[#allocation10 + $0x10] sm:$0xff]
    %v497 = vld [vmem:[#allocation10 + $0x18] sm:$0xff]
    %v498 = vld [vmem:[#allocation10 + $0x20] sm:$0xff]
    %v499 = vld [vmem:[#allocation10 + $0x28] sm:$0xff]
    %v500 = vld [vmem:[#allocation10 + $0x30] sm:$0xff]
    %v501 = vld [vmem:[#allocation10 + $0x38] sm:$0xff]
    %v502 = vld [vmem:[#allocation10 + $0x40] sm:$0xff]
    %v503 = vld [vmem:[#allocation10 + $0x48] sm:$0xff]
    %v504 = vld [vmem:[#allocation10 + $0x50] sm:$0xff]
    %v505 = vld [vmem:[#allocation10 + $0x58] sm:$0xff]
    %v506 = vld [vmem:[#allocation10 + $0x60] sm:$0xff]
    %v507 = vld [vmem:[#allocation10 + $0x68] sm:$0xff]
    %v508 = vld [vmem:[#allocation10 + $0x70] sm:$0xff]
    %v509 = vld [vmem:[#allocation10 + $0x78] sm:$0xff]
    %v510 = vld [vmem:[#allocation10 + $0x80] sm:$0xff]
    %v511 = vld [vmem:[#allocation10 + $0x88] sm:$0xff]
    %v512 = vld [vmem:[#allocation10 + $0x90] sm:$0xff]
    %v513 = vld [vmem:[#allocation10 + $0x98] sm:$0xff]
    %v514 = vld [vmem:[#allocation10 + $0xa0] sm:$0xff]
    %v515 = vld [vmem:[#allocation10 + $0xa8] sm:$0xff]
    %v516 = vld [vmem:[#allocation10 + $0xb0] sm:$0xff]
    %v517 = vld [vmem:[#allocation10 + $0xb8] sm:$0xff]
    %v518 = vld [vmem:[#allocation10 + $0xc0] sm:$0xff]
    %v519 = vld [vmem:[#allocation10 + $0xc8] sm:$0xff]
    %v520 = vld [vmem:[#allocation10 + $0xd0] sm:$0xff]
    %v521 = vld [vmem:[#allocation10 + $0xd8] sm:$0xff]
    %v522 = vld [vmem:[#allocation10 + $0xe0] sm:$0xff]
    %v523 = vld [vmem:[#allocation10 + $0xe8] sm:$0xff]
    %v524 = vld [vmem:[#allocation10 + $0xf0] sm:$0xff]
    %v525 = vld [vmem:[#allocation10 + $0xf8] sm:$0xff]
    %v526 = vld [vmem:[#allocation10 + $0x100] sm:$0xff]
    %v527 = vld [vmem:[#allocation10 + $0x108] sm:$0xff]
    %v528 = vld [vmem:[#allocation10 + $0x110] sm:$0xff]
    %v529 = vld [vmem:[#allocation10 + $0x118] sm:$0xff]
    %v530 = vld [vmem:[#allocation10 + $0x120] sm:$0xff]
    %v531 = vld [vmem:[#allocation10 + $0x128] sm:$0xff]
    %v532 = vld [vmem:[#allocation10 + $0x130] sm:$0xff]
    %v533 = vld [vmem:[#allocation10 + $0x138] sm:$0xff]
    %v534 = vld [vmem:[#allocation10 + $0x140] sm:$0xff]
    %v535 = vld [vmem:[#allocation10 + $0x148] sm:$0xff]
    %v536 = vld [vmem:[#allocation10 + $0x150] sm:$0xff]
    %v537 = vld [vmem:[#allocation10 + $0x158] sm:$0xff]
    %v538 = vld [vmem:[#allocation10 + $0x160] sm:$0xff]
    %v539 = vld [vmem:[#allocation10 + $0x168] sm:$0xff]
    %v540 = vld [vmem:[#allocation10 + $0x170] sm:$0xff]
    %v541 = vld [vmem:[#allocation10 + $0x178] sm:$0xff]
    %v542 = vld [vmem:[#allocation10 + $0x180] sm:$0xff]
    %v543 = vld [vmem:[#allocation10 + $0x188] sm:$0xff]
    %v544 = vld [vmem:[#allocation10 + $0x190] sm:$0xff]
    %v545 = vld [vmem:[#allocation10 + $0x198] sm:$0xff]
    %v546 = vld [vmem:[#allocation10 + $0x1a0] sm:$0xff]
    %v547 = vld [vmem:[#allocation10 + $0x1a8] sm:$0xff]
    %v548 = vld [vmem:[#allocation10 + $0x1b0] sm:$0xff]
    %v549 = vld [vmem:[#allocation10 + $0x1b8] sm:$0xff]
    %v550 = vld [vmem:[#allocation10 + $0x1c0] sm:$0xff]
    %v551 = vld [vmem:[#allocation10 + $0x1c8] sm:$0xff]
    %v552 = vld [vmem:[#allocation10 + $0x1d0] sm:$0xff]
    %v553 = vld [vmem:[#allocation10 + $0x1d8] sm:$0xff]
    %v554 = vld [vmem:[#allocation10 + $0x1e0] sm:$0xff]
    %v555 = vld [vmem:[#allocation10 + $0x1e8] sm:$0xff]
    %v556 = vld [vmem:[#allocation10 + $0x1f0] sm:$0xff]
    %v557 = vld [vmem:[#allocation10 + $0x1f8] sm:$0xff]
    %v558 = vld [vmem:[#allocation10 + $0x200] sm:$0xff]
    %v559 = vld [vmem:[#allocation10 + $0x208] sm:$0xff]
    %v560 = vld [vmem:[#allocation10 + $0x210] sm:$0xff]
    %v561 = vld [vmem:[#allocation10 + $0x218] sm:$0xff]
    %v562 = vld [vmem:[#allocation10 + $0x220] sm:$0xff]
    %v563 = vld [vmem:[#allocation10 + $0x228] sm:$0xff]
    %v564 = vld [vmem:[#allocation10 + $0x230] sm:$0xff]
    %v565 = vld [vmem:[#allocation10 + $0x238] sm:$0xff]
    %v566 = vld [vmem:[#allocation10 + $0x240] sm:$0xff]
    %v567 = vld [vmem:[#allocation10 + $0x248] sm:$0xff]
    %v568 = vld [vmem:[#allocation10 + $0x250] sm:$0xff]
    %v569 = vld [vmem:[#allocation10 + $0x258] sm:$0xff]
    %v570 = vld [vmem:[#allocation10 + $0x260] sm:$0xff]
    %v571 = vld [vmem:[#allocation10 + $0x268] sm:$0xff]
    %v572 = vld [vmem:[#allocation10 + $0x270] sm:$0xff]
    %v573 = vld [vmem:[#allocation10 + $0x278] sm:$0xff]
    %v574 = vld [vmem:[#allocation10 + $0x280] sm:$0xff]
    %v575 = vld [vmem:[#allocation10 + $0x288] sm:$0xff]
    %v576 = vld [vmem:[#allocation10 + $0x290] sm:$0xff]
    %v577 = vld [vmem:[#allocation10 + $0x298] sm:$0xff]
    %v578 = vld [vmem:[#allocation10 + $0x2a0] sm:$0xff]
    %v579 = vld [vmem:[#allocation10 + $0x2a8] sm:$0xff]
    %v580 = vld [vmem:[#allocation10 + $0x2b0] sm:$0xff]
    %v581 = vld [vmem:[#allocation10 + $0x2b8] sm:$0xff]
    %v582 = vld [vmem:[#allocation10 + $0x2c0] sm:$0xff]
    %v583 = vld [vmem:[#allocation10 + $0x2c8] sm:$0xff]
    %v584 = vld [vmem:[#allocation10 + $0x2d0] sm:$0xff]
    %v585 = vld [vmem:[#allocation10 + $0x2d8] sm:$0xff]
    %v586 = vld [vmem:[#allocation10 + $0x2e0] sm:$0xff]
    %v587 = vld [vmem:[#allocation10 + $0x2e8] sm:$0xff]
    %v588 = vld [vmem:[#allocation10 + $0x2f0] sm:$0xff]
    %v589 = vld [vmem:[#allocation10 + $0x2f8] sm:$0xff]
    %v590 = vld [vmem:[#allocation10 + $0x300] sm:$0xff]
    %v591 = vld [vmem:[#allocation10 + $0x308] sm:$0xff]
    %v592 = vld [vmem:[#allocation10 + $0x310] sm:$0xff]
    %v593 = vld [vmem:[#allocation10 + $0x318] sm:$0xff]
    %v594 = vld [vmem:[#allocation10 + $0x320] sm:$0xff]
    %v595 = vld [vmem:[#allocation10 + $0x328] sm:$0xff]
    %v596 = vld [vmem:[#allocation10 + $0x330] sm:$0xff]
    %v597 = vld [vmem:[#allocation10 + $0x338] sm:$0xff]
    %v598 = vld [vmem:[#allocation10 + $0x340] sm:$0xff]
    %v599 = vld [vmem:[#allocation10 + $0x348] sm:$0xff]
    %v600 = vld [vmem:[#allocation10 + $0x350] sm:$0xff]
    %v601 = vld [vmem:[#allocation10 + $0x358] sm:$0xff]
    %v602 = vld [vmem:[#allocation10 + $0x360] sm:$0xff]
    %v603 = vld [vmem:[#allocation10 + $0x368] sm:$0xff]
    %v604 = vld [vmem:[#allocation10 + $0x370] sm:$0xff]
    %v605 = vld [vmem:[#allocation10 + $0x378] sm:$0xff]
    %v606 = vld [vmem:[#allocation10 + $0x380] sm:$0xff]
    %v607 = vld [vmem:[#allocation10 + $0x388] sm:$0xff]
    %v608 = vld [vmem:[#allocation10 + $0x390] sm:$0xff]
    %v609 = vld [vmem:[#allocation10 + $0x398] sm:$0xff]
    %v610 = vld [vmem:[#allocation10 + $0x3a0] sm:$0xff]
    %v611 = vld [vmem:[#allocation10 + $0x3a8] sm:$0xff]
    %v612 = vld [vmem:[#allocation10 + $0x3b0] sm:$0xff]
    %v613 = vld [vmem:[#allocation10 + $0x3b8] sm:$0xff]
    %v614 = vld [vmem:[#allocation10 + $0x3c0] sm:$0xff]
    %v615 = vld [vmem:[#allocation10 + $0x3c8] sm:$0xff]
    %v616 = vld [vmem:[#allocation10 + $0x3d0] sm:$0xff]
    %v617 = vld [vmem:[#allocation10 + $0x3d8] sm:$0xff]
    %v618 = vld [vmem:[#allocation10 + $0x3e0] sm:$0xff]
    %v619 = vld [vmem:[#allocation10 + $0x3e8] sm:$0xff]
    %v620 = vld [vmem:[#allocation10 + $0x3f0] sm:$0xff]
    %v621 = vld [vmem:[#allocation10 + $0x3f8] sm:$0xff]
    %v622 = vld [vmem:[#allocation10 + $0x400] sm:$0xff]
    %v623 = vld [vmem:[#allocation10 + $0x408] sm:$0xff]
    %v624 = vld [vmem:[#allocation10 + $0x410] sm:$0xff]
    %v625 = vld [vmem:[#allocation10 + $0x418] sm:$0xff]
    %v626 = vld [vmem:[#allocation10 + $0x420] sm:$0xff]
    %v627 = vld [vmem:[#allocation10 + $0x428] sm:$0xff]
    %v628 = vld [vmem:[#allocation10 + $0x430] sm:$0xff]
    %v629 = vld [vmem:[#allocation10 + $0x438] sm:$0xff]
    %v630 = vld [vmem:[#allocation10 + $0x440] sm:$0xff]
    %v631 = vld [vmem:[#allocation10 + $0x448] sm:$0xff]
    %v632 = vld [vmem:[#allocation10 + $0x450] sm:$0xff]
    %v633 = vld [vmem:[#allocation10 + $0x458] sm:$0xff]
    %v634 = vld [vmem:[#allocation10 + $0x460] sm:$0xff]
    %v635 = vld [vmem:[#allocation10 + $0x468] sm:$0xff]
    %v636 = vld [vmem:[#allocation10 + $0x470] sm:$0xff]
    %v637 = vld [vmem:[#allocation10 + $0x478] sm:$0xff]
    %v638 = vld [vmem:[#allocation10 + $0x480] sm:$0xff]
    %v639 = vld [vmem:[#allocation10 + $0x488] sm:$0xff]
    %v640 = vld [vmem:[#allocation10 + $0x490] sm:$0xff]
    %v641 = vld [vmem:[#allocation10 + $0x498] sm:$0xff]
    %v642 = vld [vmem:[#allocation10 + $0x4a0] sm:$0xff]
    %v643 = vld [vmem:[#allocation10 + $0x4a8] sm:$0xff]
    %v644 = vld [vmem:[#allocation10 + $0x4b0] sm:$0xff]
    %v645 = vld [vmem:[#allocation10 + $0x4b8] sm:$0xff]
    %v646 = vld [vmem:[#allocation10 + $0x4c0] sm:$0xff]
    %v647 = vld [vmem:[#allocation10 + $0x4c8] sm:$0xff]
    %v648 = vld [vmem:[#allocation10 + $0x4d0] sm:$0xff]
    %v649 = vld [vmem:[#allocation10 + $0x4d8] sm:$0xff]
    %v650 = vld [vmem:[#allocation10 + $0x4e0] sm:$0xff]
    %v651 = vld [vmem:[#allocation10 + $0x4e8] sm:$0xff]
    %v652 = vld [vmem:[#allocation10 + $0x4f0] sm:$0xff]
    %v653 = vld [vmem:[#allocation10 + $0x4f8] sm:$0xff]
    %v654 = vld [vmem:[#allocation10 + $0x500] sm:$0xff]
    %v655 = vld [vmem:[#allocation10 + $0x508] sm:$0xff]
    %v656 = vld [vmem:[#allocation10 + $0x510] sm:$0xff]
    %v657 = vld [vmem:[#allocation10 + $0x518] sm:$0xff]
    %v658 = vld [vmem:[#allocation10 + $0x520] sm:$0xff]
    %v659 = vld [vmem:[#allocation10 + $0x528] sm:$0xff]
    %v660 = vld [vmem:[#allocation10 + $0x530] sm:$0xff]
    %v661 = vld [vmem:[#allocation10 + $0x538] sm:$0xff]
    %v662 = vld [vmem:[#allocation10 + $0x540] sm:$0xff]
    %v663 = vld [vmem:[#allocation10 + $0x548] sm:$0xff]
    %v664 = vld [vmem:[#allocation10 + $0x550] sm:$0xff]
    %v665 = vld [vmem:[#allocation10 + $0x558] sm:$0xff]
    %v666 = vld [vmem:[#allocation10 + $0x560] sm:$0xff]
    %v667 = vld [vmem:[#allocation10 + $0x568] sm:$0xff]
    %v668 = vld [vmem:[#allocation10 + $0x570] sm:$0xff]
    %v669 = vld [vmem:[#allocation10 + $0x578] sm:$0xff]
    %v670 = vld [vmem:[#allocation10 + $0x580] sm:$0xff]
    %v671 = vld [vmem:[#allocation10 + $0x588] sm:$0xff]
    %v672 = vld [vmem:[#allocation10 + $0x590] sm:$0xff]
    %v673 = vld [vmem:[#allocation10 + $0x598] sm:$0xff]
    %v674 = vld [vmem:[#allocation10 + $0x5a0] sm:$0xff]
    %v675 = vld [vmem:[#allocation10 + $0x5a8] sm:$0xff]
    %v676 = vld [vmem:[#allocation10 + $0x5b0] sm:$0xff]
    %v677 = vld [vmem:[#allocation10 + $0x5b8] sm:$0xff]
    %v678 = vld [vmem:[#allocation10 + $0x5c0] sm:$0xff]
    %v679 = vld [vmem:[#allocation10 + $0x5c8] sm:$0xff]
    %v680 = vld [vmem:[#allocation10 + $0x5d0] sm:$0xff]
    %v681 = vld [vmem:[#allocation10 + $0x5d8] sm:$0xff]
    %v682 = vld [vmem:[#allocation10 + $0x5e0] sm:$0xff]
    %v683 = vld [vmem:[#allocation10 + $0x5e8] sm:$0xff]
    %v684 = vld [vmem:[#allocation10 + $0x5f0] sm:$0xff]
    %v685 = vld [vmem:[#allocation10 + $0x5f8] sm:$0xff]
    %v686 = vld [vmem:[#allocation10 + $0x600] sm:$0xff]
    %v687 = vld [vmem:[#allocation10 + $0x608] sm:$0xff]
    %v688 = vld [vmem:[#allocation10 + $0x610] sm:$0xff]
    %v689 = vld [vmem:[#allocation10 + $0x618] sm:$0xff]
    %v690 = vld [vmem:[#allocation10 + $0x620] sm:$0xff]
    %v691 = vld [vmem:[#allocation10 + $0x628] sm:$0xff]
    %v692 = vld [vmem:[#allocation10 + $0x630] sm:$0xff]
    %v693 = vld [vmem:[#allocation10 + $0x638] sm:$0xff]
    %v694 = vld [vmem:[#allocation10 + $0x640] sm:$0xff]
    %v695 = vld [vmem:[#allocation10 + $0x648] sm:$0xff]
    %v696 = vld [vmem:[#allocation10 + $0x650] sm:$0xff]
    %v697 = vld [vmem:[#allocation10 + $0x658] sm:$0xff]
    %v698 = vld [vmem:[#allocation10 + $0x660] sm:$0xff]
    %v699 = vld [vmem:[#allocation10 + $0x668] sm:$0xff]
    %v700 = vld [vmem:[#allocation10 + $0x670] sm:$0xff]
    %v701 = vld [vmem:[#allocation10 + $0x678] sm:$0xff]
    %v702 = vld [vmem:[#allocation10 + $0x680] sm:$0xff]
    %v703 = vld [vmem:[#allocation10 + $0x688] sm:$0xff]
    %v704 = vld [vmem:[#allocation10 + $0x690] sm:$0xff]
    %v705 = vld [vmem:[#allocation10 + $0x698] sm:$0xff]
    %v706 = vld [vmem:[#allocation10 + $0x6a0] sm:$0xff]
    %v707 = vld [vmem:[#allocation10 + $0x6a8] sm:$0xff]
    %v708 = vld [vmem:[#allocation10 + $0x6b0] sm:$0xff]
    %v709 = vld [vmem:[#allocation10 + $0x6b8] sm:$0xff]
    %v710 = vld [vmem:[#allocation10 + $0x6c0] sm:$0xff]
    %v711 = vld [vmem:[#allocation10 + $0x6c8] sm:$0xff]
    %v712 = vld [vmem:[#allocation10 + $0x6d0] sm:$0xff]
    %v713 = vld [vmem:[#allocation10 + $0x6d8] sm:$0xff]
    %v714 = vld [vmem:[#allocation10 + $0x6e0] sm:$0xff]
    %v715 = vld [vmem:[#allocation10 + $0x6e8] sm:$0xff]
    %v716 = vld [vmem:[#allocation10 + $0x6f0] sm:$0xff]
    %v717 = vld [vmem:[#allocation10 + $0x6f8] sm:$0xff]
    %v718 = vld [vmem:[#allocation10 + $0x700] sm:$0xff]
    %v719 = vld [vmem:[#allocation10 + $0x708] sm:$0xff]
    %v720 = vld [vmem:[#allocation10 + $0x710] sm:$0xff]
    %v721 = vld [vmem:[#allocation10 + $0x718] sm:$0xff]
    %v722 = vld [vmem:[#allocation10 + $0x720] sm:$0xff]
    %v723 = vld [vmem:[#allocation10 + $0x728] sm:$0xff]
    %v724 = vld [vmem:[#allocation10 + $0x730] sm:$0xff]
    %v725 = vld [vmem:[#allocation10 + $0x738] sm:$0xff]
    %v726 = vld [vmem:[#allocation10 + $0x740] sm:$0xff]
    %v727 = vld [vmem:[#allocation10 + $0x748] sm:$0xff]
    %v728 = vld [vmem:[#allocation10 + $0x750] sm:$0xff]
    %v729 = vld [vmem:[#allocation10 + $0x758] sm:$0xff]
    %v730 = vld [vmem:[#allocation10 + $0x760] sm:$0xff]
    %v731 = vld [vmem:[#allocation10 + $0x768] sm:$0xff]
    %v732 = vld [vmem:[#allocation10 + $0x770] sm:$0xff]
    %v733 = vld [vmem:[#allocation10 + $0x778] sm:$0xff]
    %v734 = vld [vmem:[#allocation10 + $0x780] sm:$0xff]
    %v735 = vld [vmem:[#allocation10 + $0x788] sm:$0xff]
    %v736 = vld [vmem:[#allocation10 + $0x790] sm:$0xff]
    %v737 = vld [vmem:[#allocation10 + $0x798] sm:$0xff]
    %v738 = vld [vmem:[#allocation10 + $0x7a0] sm:$0xff]
    %v739 = vld [vmem:[#allocation10 + $0x7a8] sm:$0xff]
    %v740 = vld [vmem:[#allocation10 + $0x7b0] sm:$0xff]
    %v741 = vld [vmem:[#allocation10 + $0x7b8] sm:$0xff]
    %v742 = vld [vmem:[#allocation10 + $0x7c0] sm:$0xff]
    %v743 = vld [vmem:[#allocation10 + $0x7c8] sm:$0xff]
    %v744 = vld [vmem:[#allocation10 + $0x7d0] sm:$0xff]
    %v745 = vld [vmem:[#allocation10 + $0x7d8] sm:$0xff]
    %v746 = vld [vmem:[#allocation10 + $0x7e0] sm:$0xff]
    %v747 = vld [vmem:[#allocation10 + $0x7e8] sm:$0xff]
    %v748 = vld [vmem:[#allocation10 + $0x7f0] sm:$0xff]
    %v749 = vld [vmem:[#allocation10 + $0x7f8] sm:$0xff]
    %v750 = vpack.c.bf16 %v495, %v494
    %v751 = vpack.c.bf16 %v497, %v496
    %v752 = vpack.c.bf16 %v499, %v498
    %v753 = vpack.c.bf16 %v501, %v500
    %v754 = vpack.c.bf16 %v503, %v502
    %v755 = vpack.c.bf16 %v505, %v504
    %v756 = vpack.c.bf16 %v507, %v506
    %v757 = vpack.c.bf16 %v509, %v508
    %v758 = vpack.c.bf16 %v511, %v510
    %v759 = vpack.c.bf16 %v513, %v512
    %v760 = vpack.c.bf16 %v515, %v514
    %v761 = vpack.c.bf16 %v517, %v516
    %v762 = vpack.c.bf16 %v519, %v518
    %v763 = vpack.c.bf16 %v521, %v520
    %v764 = vpack.c.bf16 %v523, %v522
    %v765 = vpack.c.bf16 %v525, %v524
    %v766 = vpack.c.bf16 %v527, %v526
    %v767 = vpack.c.bf16 %v529, %v528
    %v768 = vpack.c.bf16 %v531, %v530
    %v769 = vpack.c.bf16 %v533, %v532
    %v770 = vpack.c.bf16 %v535, %v534
    %v771 = vpack.c.bf16 %v537, %v536
    %v772 = vpack.c.bf16 %v539, %v538
    %v773 = vpack.c.bf16 %v541, %v540
    %v774 = vpack.c.bf16 %v543, %v542
    %v775 = vpack.c.bf16 %v545, %v544
    %v776 = vpack.c.bf16 %v547, %v546
    %v777 = vpack.c.bf16 %v549, %v548
    %v778 = vpack.c.bf16 %v551, %v550
    %v779 = vpack.c.bf16 %v553, %v552
    %v780 = vpack.c.bf16 %v555, %v554
    %v781 = vpack.c.bf16 %v557, %v556
    %v782 = vpack.c.bf16 %v559, %v558
    %v783 = vpack.c.bf16 %v561, %v560
    %v784 = vpack.c.bf16 %v563, %v562
    %v785 = vpack.c.bf16 %v565, %v564
    %v786 = vpack.c.bf16 %v567, %v566
    %v787 = vpack.c.bf16 %v569, %v568
    %v788 = vpack.c.bf16 %v571, %v570
    %v789 = vpack.c.bf16 %v573, %v572
    %v790 = vpack.c.bf16 %v575, %v574
    %v791 = vpack.c.bf16 %v577, %v576
    %v792 = vpack.c.bf16 %v579, %v578
    %v793 = vpack.c.bf16 %v581, %v580
    %v794 = vpack.c.bf16 %v583, %v582
    %v795 = vpack.c.bf16 %v585, %v584
    %v796 = vpack.c.bf16 %v587, %v586
    %v797 = vpack.c.bf16 %v589, %v588
    %v798 = vpack.c.bf16 %v591, %v590
    %v799 = vpack.c.bf16 %v593, %v592
    %v800 = vpack.c.bf16 %v595, %v594
    %v801 = vpack.c.bf16 %v597, %v596
    %v802 = vpack.c.bf16 %v599, %v598
    %v803 = vpack.c.bf16 %v601, %v600
    %v804 = vpack.c.bf16 %v603, %v602
    %v805 = vpack.c.bf16 %v605, %v604
    %v806 = vpack.c.bf16 %v607, %v606
    %v807 = vpack.c.bf16 %v609, %v608
    %v808 = vpack.c.bf16 %v611, %v610
    %v809 = vpack.c.bf16 %v613, %v612
    %v810 = vpack.c.bf16 %v615, %v614
    %v811 = vpack.c.bf16 %v617, %v616
    %v812 = vpack.c.bf16 %v619, %v618
    %v813 = vpack.c.bf16 %v621, %v620
    %v814 = vpack.c.bf16 %v623, %v622
    %v815 = vpack.c.bf16 %v625, %v624
    %v816 = vpack.c.bf16 %v627, %v626
    %v817 = vpack.c.bf16 %v629, %v628
    %v818 = vpack.c.bf16 %v631, %v630
    %v819 = vpack.c.bf16 %v633, %v632
    %v820 = vpack.c.bf16 %v635, %v634
    %v821 = vpack.c.bf16 %v637, %v636
    %v822 = vpack.c.bf16 %v639, %v638
    %v823 = vpack.c.bf16 %v641, %v640
    %v824 = vpack.c.bf16 %v643, %v642
    %v825 = vpack.c.bf16 %v645, %v644
    %v826 = vpack.c.bf16 %v647, %v646
    %v827 = vpack.c.bf16 %v649, %v648
    %v828 = vpack.c.bf16 %v651, %v650
    %v829 = vpack.c.bf16 %v653, %v652
    %v830 = vpack.c.bf16 %v655, %v654
    %v831 = vpack.c.bf16 %v657, %v656
    %v832 = vpack.c.bf16 %v659, %v658
    %v833 = vpack.c.bf16 %v661, %v660
    %v834 = vpack.c.bf16 %v663, %v662
    %v835 = vpack.c.bf16 %v665, %v664
    %v836 = vpack.c.bf16 %v667, %v666
    %v837 = vpack.c.bf16 %v669, %v668
    %v838 = vpack.c.bf16 %v671, %v670
    %v839 = vpack.c.bf16 %v673, %v672
    %v840 = vpack.c.bf16 %v675, %v674
    %v841 = vpack.c.bf16 %v677, %v676
    %v842 = vpack.c.bf16 %v679, %v678
    %v843 = vpack.c.bf16 %v681, %v680
    %v844 = vpack.c.bf16 %v683, %v682
    %v845 = vpack.c.bf16 %v685, %v684
    %v846 = vpack.c.bf16 %v687, %v686
    %v847 = vpack.c.bf16 %v689, %v688
    %v848 = vpack.c.bf16 %v691, %v690
    %v849 = vpack.c.bf16 %v693, %v692
    %v850 = vpack.c.bf16 %v695, %v694
    %v851 = vpack.c.bf16 %v697, %v696
    %v852 = vpack.c.bf16 %v699, %v698
    %v853 = vpack.c.bf16 %v701, %v700
    %v854 = vpack.c.bf16 %v703, %v702
    %v855 = vpack.c.bf16 %v705, %v704
    %v856 = vpack.c.bf16 %v707, %v706
    %v857 = vpack.c.bf16 %v709, %v708
    %v858 = vpack.c.bf16 %v711, %v710
    %v859 = vpack.c.bf16 %v713, %v712
    %v860 = vpack.c.bf16 %v715, %v714
    %v861 = vpack.c.bf16 %v717, %v716
    %v862 = vpack.c.bf16 %v719, %v718
    %v863 = vpack.c.bf16 %v721, %v720
    %v864 = vpack.c.bf16 %v723, %v722
    %v865 = vpack.c.bf16 %v725, %v724
    %v866 = vpack.c.bf16 %v727, %v726
    %v867 = vpack.c.bf16 %v729, %v728
    %v868 = vpack.c.bf16 %v731, %v730
    %v869 = vpack.c.bf16 %v733, %v732
    %v870 = vpack.c.bf16 %v735, %v734
    %v871 = vpack.c.bf16 %v737, %v736
    %v872 = vpack.c.bf16 %v739, %v738
    %v873 = vpack.c.bf16 %v741, %v740
    %v874 = vpack.c.bf16 %v743, %v742
    %v875 = vpack.c.bf16 %v745, %v744
    %v876 = vpack.c.bf16 %v747, %v746
    %v877 = vpack.c.bf16 %v749, %v748
    %878 = vmatprep.subr.bf16.mxu0 0
    %879 = vmatpush1.bf16.xpose.msra.mxu0 %v366
    %880 = vmatprep.subr.bf16.mxu0 0
    %881 = vmatpush1.bf16.xpose.msra.mxu0 %v367
    %882 = vmatprep.subr.bf16.mxu0 0
    %883 = vmatpush1.bf16.xpose.msra.mxu0 %v368
    %884 = vmatprep.subr.bf16.mxu0 0
    %885 = vmatpush1.bf16.xpose.msra.mxu0 %v369
    %886 = vmatprep.subr.bf16.mxu0 0
    %887 = vmatpush1.bf16.xpose.msra.mxu0 %v370
    %888 = vmatprep.subr.bf16.mxu0 0
    %889 = vmatpush1.bf16.xpose.msra.mxu0 %v371
    %890 = vmatprep.subr.bf16.mxu0 0
    %891 = vmatpush1.bf16.xpose.msra.mxu0 %v372
    %892 = vmatprep.subr.bf16.mxu0 0
    %893 = vmatpush1.bf16.xpose.msra.mxu0 %v373
    %894 = vmatprep.subr.bf16.mxu0 0
    %895 = vmatpush1.bf16.xpose.msra.mxu0 %v374
    %896 = vmatprep.subr.bf16.mxu0 0
    %897 = vmatpush1.bf16.xpose.msra.mxu0 %v375
    %898 = vmatprep.subr.bf16.mxu0 0
    %899 = vmatpush1.bf16.xpose.msra.mxu0 %v376
    %900 = vmatprep.subr.bf16.mxu0 0
    %901 = vmatpush1.bf16.xpose.msra.mxu0 %v377
    %902 = vmatprep.subr.bf16.mxu0 0
    %903 = vmatpush1.bf16.xpose.msra.mxu0 %v378
    %904 = vmatprep.subr.bf16.mxu0 0
    %905 = vmatpush1.bf16.xpose.msra.mxu0 %v379
    %906 = vmatprep.subr.bf16.mxu0 0
    %907 = vmatpush1.bf16.xpose.msra.mxu0 %v380
    %908 = vmatprep.subr.bf16.mxu0 0
    %909 = vmatpush1.bf16.xpose.msra.mxu0 %v381
    %910 = vmatprep.mubr.bf16.mxu0 0
    %911 = vmatmul.mubr.bf16.gmra.mrb[0].mxu0 %v102
    %v912 = vpop.f32.mrb[0].mxu0
    %v913 = vadd.f32 0.0, %v912
    %v914 = vpop.f32.mrb[0].mxu0
    %v915 = vadd.f32 0.0, %v914
    %v916 = vpop.f32.mrb[0].mxu0
    %v917 = vpop.f32.mrb[0].mxu0
    %918 = vdwg.mxu0
    %919 = vmatprep.subr.bf16.mxu0 0
    %920 = vmatpush1.bf16.xpose.msra.mxu0 %v382
    %921 = vmatprep.subr.bf16.mxu0 0
    %922 = vmatpush1.bf16.xpose.msra.mxu0 %v383
    %923 = vmatprep.subr.bf16.mxu0 0
    %924 = vmatpush1.bf16.xpose.msra.mxu0 %v384
    %925 = vmatprep.subr.bf16.mxu0 0
    %926 = vmatpush1.bf16.xpose.msra.mxu0 %v385
    %927 = vmatprep.subr.bf16.mxu0 0
    %928 = vmatpush1.bf16.xpose.msra.mxu0 %v386
    %929 = vmatprep.subr.bf16.mxu0 0
    %930 = vmatpush1.bf16.xpose.msra.mxu0 %v387
    %931 = vmatprep.subr.bf16.mxu0 0
    %932 = vmatpush1.bf16.xpose.msra.mxu0 %v388
    %933 = vmatprep.subr.bf16.mxu0 0
    %934 = vmatpush1.bf16.xpose.msra.mxu0 %v389
    %935 = vmatprep.subr.bf16.mxu0 0
    %936 = vmatpush1.bf16.xpose.msra.mxu0 %v390
    %937 = vmatprep.subr.bf16.mxu0 0
    %938 = vmatpush1.bf16.xpose.msra.mxu0 %v391
    %939 = vmatprep.subr.bf16.mxu0 0
    %940 = vmatpush1.bf16.xpose.msra.mxu0 %v392
    %941 = vmatprep.subr.bf16.mxu0 0
    %942 = vmatpush1.bf16.xpose.msra.mxu0 %v393
    %943 = vmatprep.subr.bf16.mxu0 0
    %944 = vmatpush1.bf16.xpose.msra.mxu0 %v394
    %945 = vmatprep.subr.bf16.mxu0 0
    %946 = vmatpush1.bf16.xpose.msra.mxu0 %v395
    %947 = vmatprep.subr.bf16.mxu0 0
    %948 = vmatpush1.bf16.xpose.msra.mxu0 %v396
    %949 = vmatprep.subr.bf16.mxu0 0
    %950 = vmatpush1.bf16.xpose.msra.mxu0 %v397
    %951 = vmatprep.mubr.bf16.mxu0 0
    %952 = vmatmul.mubr.bf16.gmra.mrb[0].mxu0 %v103
    %v953 = vpop.f32.mrb[0].mxu0
    %v954 = vadd.f32 0.0, %v953
    %v955 = vpop.f32.mrb[0].mxu0
    %v956 = vadd.f32 0.0, %v955
    %v957 = vpop.f32.mrb[0].mxu0
    %v958 = vpop.f32.mrb[0].mxu0
    %959 = vdwg.mxu0
    %960 = vmatprep.subr.bf16.mxu0 0
    %961 = vmatpush1.bf16.xpose.msra.mxu0 %v398
    %962 = vmatprep.subr.bf16.mxu0 0
    %963 = vmatpush1.bf16.xpose.msra.mxu0 %v399
    %964 = vmatprep.subr.bf16.mxu0 0
    %965 = vmatpush1.bf16.xpose.msra.mxu0 %v400
    %966 = vmatprep.subr.bf16.mxu0 0
    %967 = vmatpush1.bf16.xpose.msra.mxu0 %v401
    %968 = vmatprep.subr.bf16.mxu0 0
    %969 = vmatpush1.bf16.xpose.msra.mxu0 %v402
    %970 = vmatprep.subr.bf16.mxu0 0
    %971 = vmatpush1.bf16.xpose.msra.mxu0 %v403
    %972 = vmatprep.subr.bf16.mxu0 0
    %973 = vmatpush1.bf16.xpose.msra.mxu0 %v404
    %974 = vmatprep.subr.bf16.mxu0 0
    %975 = vmatpush1.bf16.xpose.msra.mxu0 %v405
    %976 = vmatprep.subr.bf16.mxu0 0
    %977 = vmatpush1.bf16.xpose.msra.mxu0 %v406
    %978 = vmatprep.subr.bf16.mxu0 0
    %979 = vmatpush1.bf16.xpose.msra.mxu0 %v407
    %980 = vmatprep.subr.bf16.mxu0 0
    %981 = vmatpush1.bf16.xpose.msra.mxu0 %v408
    %982 = vmatprep.subr.bf16.mxu0 0
    %983 = vmatpush1.bf16.xpose.msra.mxu0 %v409
    %984 = vmatprep.subr.bf16.mxu0 0
    %985 = vmatpush1.bf16.xpose.msra.mxu0 %v410
    %986 = vmatprep.subr.bf16.mxu0 0
    %987 = vmatpush1.bf16.xpose.msra.mxu0 %v411
    %988 = vmatprep.subr.bf16.mxu0 0
    %989 = vmatpush1.bf16.xpose.msra.mxu0 %v412
    %990 = vmatprep.subr.bf16.mxu0 0
    %991 = vmatpush1.bf16.xpose.msra.mxu0 %v413
    %992 = vmatprep.mubr.bf16.mxu0 0
    %993 = vmatmul.mubr.bf16.gmra.mrb[0].mxu0 %v104
    %v994 = vpop.f32.mrb[0].mxu0
    %v995 = vadd.f32 0.0, %v994
    %v996 = vpop.f32.mrb[0].mxu0
    %v997 = vadd.f32 0.0, %v996
    %v998 = vpop.f32.mrb[0].mxu0
    %v999 = vpop.f32.mrb[0].mxu0
    %1000 = vdwg.mxu0
    %1001 = vmatprep.subr.bf16.mxu0 0
    %1002 = vmatpush1.bf16.xpose.msra.mxu0 %v414
    %1003 = vmatprep.subr.bf16.mxu0 0
    %1004 = vmatpush1.bf16.xpose.msra.mxu0 %v415
    %1005 = vmatprep.subr.bf16.mxu0 0
    %1006 = vmatpush1.bf16.xpose.msra.mxu0 %v416
    %1007 = vmatprep.subr.bf16.mxu0 0
    %1008 = vmatpush1.bf16.xpose.msra.mxu0 %v417
    %1009 = vmatprep.subr.bf16.mxu0 0
    %1010 = vmatpush1.bf16.xpose.msra.mxu0 %v418
    %1011 = vmatprep.subr.bf16.mxu0 0
    %1012 = vmatpush1.bf16.xpose.msra.mxu0 %v419
    %1013 = vmatprep.subr.bf16.mxu0 0
    %1014 = vmatpush1.bf16.xpose.msra.mxu0 %v420
    %1015 = vmatprep.subr.bf16.mxu0 0
    %1016 = vmatpush1.bf16.xpose.msra.mxu0 %v421
    %1017 = vmatprep.subr.bf16.mxu0 0
    %1018 = vmatpush1.bf16.xpose.msra.mxu0 %v422
    %1019 = vmatprep.subr.bf16.mxu0 0
    %1020 = vmatpush1.bf16.xpose.msra.mxu0 %v423
    %1021 = vmatprep.subr.bf16.mxu0 0
    %1022 = vmatpush1.bf16.xpose.msra.mxu0 %v424
    %1023 = vmatprep.subr.bf16.mxu0 0
    %1024 = vmatpush1.bf16.xpose.msra.mxu0 %v425
    %1025 = vmatprep.subr.bf16.mxu0 0
    %1026 = vmatpush1.bf16.xpose.msra.mxu0 %v426
    %1027 = vmatprep.subr.bf16.mxu0 0
    %1028 = vmatpush1.bf16.xpose.msra.mxu0 %v427
    %1029 = vmatprep.subr.bf16.mxu0 0
    %1030 = vmatpush1.bf16.xpose.msra.mxu0 %v428
    %1031 = vmatprep.subr.bf16.mxu0 0
    %1032 = vmatpush1.bf16.xpose.msra.mxu0 %v429
    %1033 = vmatprep.mubr.bf16.mxu0 0
    %1034 = vmatmul.mubr.bf16.gmra.mrb[0].mxu0 %v105
    %v1035 = vpop.f32.mrb[0].mxu0
    %v1036 = vadd.f32 0.0, %v1035
    %v1037 = vpop.f32.mrb[0].mxu0
    %v1038 = vadd.f32 0.0, %v1037
    %v1039 = vpop.f32.mrb[0].mxu0
    %v1040 = vpop.f32.mrb[0].mxu0
    %1041 = vdwg.mxu0
    %1042 = vmatprep.subr.bf16.mxu0 0
    %1043 = vmatpush1.bf16.xpose.msra.mxu0 %v430
    %1044 = vmatprep.subr.bf16.mxu0 0
    %1045 = vmatpush1.bf16.xpose.msra.mxu0 %v431
    %1046 = vmatprep.subr.bf16.mxu0 0
    %1047 = vmatpush1.bf16.xpose.msra.mxu0 %v432
    %1048 = vmatprep.subr.bf16.mxu0 0
    %1049 = vmatpush1.bf16.xpose.msra.mxu0 %v433
    %1050 = vmatprep.subr.bf16.mxu0 0
    %1051 = vmatpush1.bf16.xpose.msra.mxu0 %v434
    %1052 = vmatprep.subr.bf16.mxu0 0
    %1053 = vmatpush1.bf16.xpose.msra.mxu0 %v435
    %1054 = vmatprep.subr.bf16.mxu0 0
    %1055 = vmatpush1.bf16.xpose.msra.mxu0 %v436
    %1056 = vmatprep.subr.bf16.mxu0 0
    %1057 = vmatpush1.bf16.xpose.msra.mxu0 %v437
    %1058 = vmatprep.subr.bf16.mxu0 0
    %1059 = vmatpush1.bf16.xpose.msra.mxu0 %v438
    %1060 = vmatprep.subr.bf16.mxu0 0
    %1061 = vmatpush1.bf16.xpose.msra.mxu0 %v439
    %1062 = vmatprep.subr.bf16.mxu0 0
    %1063 = vmatpush1.bf16.xpose.msra.mxu0 %v440
    %1064 = vmatprep.subr.bf16.mxu0 0
    %1065 = vmatpush1.bf16.xpose.msra.mxu0 %v441
    %1066 = vmatprep.subr.bf16.mxu0 0
    %1067 = vmatpush1.bf16.xpose.msra.mxu0 %v442
    %1068 = vmatprep.subr.bf16.mxu0 0
    %1069 = vmatpush1.bf16.xpose.msra.mxu0 %v443
    %1070 = vmatprep.subr.bf16.mxu0 0
    %1071 = vmatpush1.bf16.xpose.msra.mxu0 %v444
    %1072 = vmatprep.subr.bf16.mxu0 0
    %1073 = vmatpush1.bf16.xpose.msra.mxu0 %v445
    %1074 = vmatprep.mubr.bf16.mxu0 0
    %1075 = vmatmul.mubr.bf16.gmra.mrb[0].mxu0 %v106
    %v1076 = vpop.f32.mrb[0].mxu0
    %v1077 = vadd.f32 0.0, %v1076
    %v1078 = vpop.f32.mrb[0].mxu0
    %v1079 = vadd.f32 0.0, %v1078
    %v1080 = vpop.f32.mrb[0].mxu0
    %v1081 = vpop.f32.mrb[0].mxu0
    %1082 = vdwg.mxu0
    %1083 = vmatprep.subr.bf16.mxu0 0
    %1084 = vmatpush1.bf16.xpose.msra.mxu0 %v446
    %1085 = vmatprep.subr.bf16.mxu0 0
    %1086 = vmatpush1.bf16.xpose.msra.mxu0 %v447
    %1087 = vmatprep.subr.bf16.mxu0 0
    %1088 = vmatpush1.bf16.xpose.msra.mxu0 %v448
    %1089 = vmatprep.subr.bf16.mxu0 0
    %1090 = vmatpush1.bf16.xpose.msra.mxu0 %v449
    %1091 = vmatprep.subr.bf16.mxu0 0
    %1092 = vmatpush1.bf16.xpose.msra.mxu0 %v450
    %1093 = vmatprep.subr.bf16.mxu0 0
    %1094 = vmatpush1.bf16.xpose.msra.mxu0 %v451
    %1095 = vmatprep.subr.bf16.mxu0 0
    %1096 = vmatpush1.bf16.xpose.msra.mxu0 %v452
    %1097 = vmatprep.subr.bf16.mxu0 0
    %1098 = vmatpush1.bf16.xpose.msra.mxu0 %v453
    %1099 = vmatprep.subr.bf16.mxu0 0
    %1100 = vmatpush1.bf16.xpose.msra.mxu0 %v454
    %1101 = vmatprep.subr.bf16.mxu0 0
    %1102 = vmatpush1.bf16.xpose.msra.mxu0 %v455
    %1103 = vmatprep.subr.bf16.mxu0 0
    %1104 = vmatpush1.bf16.xpose.msra.mxu0 %v456
    %1105 = vmatprep.subr.bf16.mxu0 0
    %1106 = vmatpush1.bf16.xpose.msra.mxu0 %v457
    %1107 = vmatprep.subr.bf16.mxu0 0
    %1108 = vmatpush1.bf16.xpose.msra.mxu0 %v458
    %1109 = vmatprep.subr.bf16.mxu0 0
    %1110 = vmatpush1.bf16.xpose.msra.mxu0 %v459
    %1111 = vmatprep.subr.bf16.mxu0 0
    %1112 = vmatpush1.bf16.xpose.msra.mxu0 %v460
    %1113 = vmatprep.subr.bf16.mxu0 0
    %1114 = vmatpush1.bf16.xpose.msra.mxu0 %v461
    %1115 = vmatprep.mubr.bf16.mxu0 0
    %1116 = vmatmul.mubr.bf16.gmra.mrb[0].mxu0 %v107
    %v1117 = vpop.f32.mrb[0].mxu0
    %v1118 = vadd.f32 0.0, %v1117
    %v1119 = vpop.f32.mrb[0].mxu0
    %v1120 = vadd.f32 0.0, %v1119
    %v1121 = vpop.f32.mrb[0].mxu0
    %v1122 = vpop.f32.mrb[0].mxu0
    %1123 = vdwg.mxu0
    %1124 = vmatprep.subr.bf16.mxu0 0
    %1125 = vmatpush1.bf16.xpose.msra.mxu0 %v462
    %1126 = vmatprep.subr.bf16.mxu0 0
    %1127 = vmatpush1.bf16.xpose.msra.mxu0 %v463
    %1128 = vmatprep.subr.bf16.mxu0 0
    %1129 = vmatpush1.bf16.xpose.msra.mxu0 %v464
    %1130 = vmatprep.subr.bf16.mxu0 0
    %1131 = vmatpush1.bf16.xpose.msra.mxu0 %v465
    %1132 = vmatprep.subr.bf16.mxu0 0
    %1133 = vmatpush1.bf16.xpose.msra.mxu0 %v466
    %1134 = vmatprep.subr.bf16.mxu0 0
    %1135 = vmatpush1.bf16.xpose.msra.mxu0 %v467
    %1136 = vmatprep.subr.bf16.mxu0 0
    %1137 = vmatpush1.bf16.xpose.msra.mxu0 %v468
    %1138 = vmatprep.subr.bf16.mxu0 0
    %1139 = vmatpush1.bf16.xpose.msra.mxu0 %v469
    %1140 = vmatprep.subr.bf16.mxu0 0
    %1141 = vmatpush1.bf16.xpose.msra.mxu0 %v470
    %1142 = vmatprep.subr.bf16.mxu0 0
    %1143 = vmatpush1.bf16.xpose.msra.mxu0 %v471
    %1144 = vmatprep.subr.bf16.mxu0 0
    %1145 = vmatpush1.bf16.xpose.msra.mxu0 %v472
    %1146 = vmatprep.subr.bf16.mxu0 0
    %1147 = vmatpush1.bf16.xpose.msra.mxu0 %v473
    %1148 = vmatprep.subr.bf16.mxu0 0
    %1149 = vmatpush1.bf16.xpose.msra.mxu0 %v474
    %1150 = vmatprep.subr.bf16.mxu0 0
    %1151 = vmatpush1.bf16.xpose.msra.mxu0 %v475
    %1152 = vmatprep.subr.bf16.mxu0 0
    %1153 = vmatpush1.bf16.xpose.msra.mxu0 %v476
    %1154 = vmatprep.subr.bf16.mxu0 0
    %1155 = vmatpush1.bf16.xpose.msra.mxu0 %v477
    %1156 = vmatprep.mubr.bf16.mxu0 0
    %1157 = vmatmul.mubr.bf16.gmra.mrb[0].mxu0 %v108
    %v1158 = vpop.f32.mrb[0].mxu0
    %v1159 = vadd.f32 0.0, %v1158
    %v1160 = vpop.f32.mrb[0].mxu0
    %v1161 = vadd.f32 0.0, %v1160
    %v1162 = vpop.f32.mrb[0].mxu0
    %v1163 = vpop.f32.mrb[0].mxu0
    %1164 = vdwg.mxu0
    %1165 = vmatprep.subr.bf16.mxu0 0
    %1166 = vmatpush1.bf16.xpose.msra.mxu0 %v478
    %1167 = vmatprep.subr.bf16.mxu0 0
    %1168 = vmatpush1.bf16.xpose.msra.mxu0 %v479
    %1169 = vmatprep.subr.bf16.mxu0 0
    %1170 = vmatpush1.bf16.xpose.msra.mxu0 %v480
    %1171 = vmatprep.subr.bf16.mxu0 0
    %1172 = vmatpush1.bf16.xpose.msra.mxu0 %v481
    %1173 = vmatprep.subr.bf16.mxu0 0
    %1174 = vmatpush1.bf16.xpose.msra.mxu0 %v482
    %1175 = vmatprep.subr.bf16.mxu0 0
    %1176 = vmatpush1.bf16.xpose.msra.mxu0 %v483
    %1177 = vmatprep.subr.bf16.mxu0 0
    %1178 = vmatpush1.bf16.xpose.msra.mxu0 %v484
    %1179 = vmatprep.subr.bf16.mxu0 0
    %1180 = vmatpush1.bf16.xpose.msra.mxu0 %v485
    %1181 = vmatprep.subr.bf16.mxu0 0
    %1182 = vmatpush1.bf16.xpose.msra.mxu0 %v486
    %1183 = vmatprep.subr.bf16.mxu0 0
    %1184 = vmatpush1.bf16.xpose.msra.mxu0 %v487
    %1185 = vmatprep.subr.bf16.mxu0 0
    %1186 = vmatpush1.bf16.xpose.msra.mxu0 %v488
    %1187 = vmatprep.subr.bf16.mxu0 0
    %1188 = vmatpush1.bf16.xpose.msra.mxu0 %v489
    %1189 = vmatprep.subr.bf16.mxu0 0
    %1190 = vmatpush1.bf16.xpose.msra.mxu0 %v490
    %1191 = vmatprep.subr.bf16.mxu0 0
    %1192 = vmatpush1.bf16.xpose.msra.mxu0 %v491
    %1193 = vmatprep.subr.bf16.mxu0 0
    %1194 = vmatpush1.bf16.xpose.msra.mxu0 %v492
    %1195 = vmatprep.subr.bf16.mxu0 0
    %1196 = vmatpush1.bf16.xpose.msra.mxu0 %v493
    %1197 = vmatprep.mubr.bf16.mxu0 0
    %1198 = vmatmul.mubr.bf16.gmra.mrb[0].mxu0 %v109
    %v1199 = vpop.f32.mrb[0].mxu0
    %v1200 = vadd.f32 0.0, %v1199
    %v1201 = vpop.f32.mrb[0].mxu0
    %v1202 = vadd.f32 0.0, %v1201
    %v1203 = vpop.f32.mrb[0].mxu0
    %v1204 = vpop.f32.mrb[0].mxu0
    %1205 = vdwg.mxu0
    %v1206 = vld [vmem:[#allocation2] sm:$0xf]
    %v1207 = vld [vmem:[#allocation2 + $0x4] sm:$0xf]
    %v1208 = vld [vmem:[#allocation2 + $0x8] sm:$0xf]
    %v1209 = vld [vmem:[#allocation2 + $0xc] sm:$0xf]
    %v1210 = vld [vmem:[#allocation2 + $0x10] sm:$0xf]
    %v1211 = vld [vmem:[#allocation2 + $0x14] sm:$0xf]
    %v1212 = vld [vmem:[#allocation2 + $0x18] sm:$0xf]
    %v1213 = vld [vmem:[#allocation2 + $0x1c] sm:$0xf]
    %vm1214 = vcmask 1043456
    %v1215 = vsel %vm1214, %v913, -inf
    %v1216 = vsel %vm1214, %v915, -inf
    %v1217 = vmax.f32 %v1215, %v1216
    %1218 = vmax.xlane.f32.xlu0 %v1217
    %v1219 = vpop.xlane.xlu0 %1218
    %v1220 = vsel %vm1214, %v954, -inf
    %v1221 = vsel %vm1214, %v956, -inf
    %v1222 = vmax.f32 %v1220, %v1221
    %1223 = vmax.xlane.f32.xlu0 %v1222
    %v1224 = vpop.xlane.xlu0 %1223
    %v1225 = vsel %vm1214, %v995, -inf
    %v1226 = vsel %vm1214, %v997, -inf
    %v1227 = vmax.f32 %v1225, %v1226
    %1228 = vmax.xlane.f32.xlu0 %v1227
    %v1229 = vpop.xlane.xlu0 %1228
    %v1230 = vsel %vm1214, %v1036, -inf
    %v1231 = vsel %vm1214, %v1038, -inf
    %v1232 = vmax.f32 %v1230, %v1231
    %1233 = vmax.xlane.f32.xlu0 %v1232
    %v1234 = vpop.xlane.xlu0 %1233
    %v1235 = vsel %vm1214, %v1077, -inf
    %v1236 = vsel %vm1214, %v1079, -inf
    %v1237 = vmax.f32 %v1235, %v1236
    %1238 = vmax.xlane.f32.xlu0 %v1237
    %v1239 = vpop.xlane.xlu0 %1238
    %v1240 = vsel %vm1214, %v1118, -inf
    %v1241 = vsel %vm1214, %v1120, -inf
    %v1242 = vmax.f32 %v1240, %v1241
    %1243 = vmax.xlane.f32.xlu0 %v1242
    %v1244 = vpop.xlane.xlu0 %1243
    %v1245 = vsel %vm1214, %v1159, -inf
    %v1246 = vsel %vm1214, %v1161, -inf
    %v1247 = vmax.f32 %v1245, %v1246
    %1248 = vmax.xlane.f32.xlu0 %v1247
    %v1249 = vpop.xlane.xlu0 %1248
    %v1250 = vsel %vm1214, %v1200, -inf
    %v1251 = vsel %vm1214, %v1202, -inf
    %v1252 = vmax.f32 %v1250, %v1251
    %1253 = vmax.xlane.f32.xlu0 %v1252
    %v1254 = vpop.xlane.xlu0 %1253
    %v1255 = vmax.f32 %v1206, %v1219
    %v1256 = vmax.f32 %v1207, %v1224
    %v1257 = vmax.f32 %v1208, %v1229
    %v1258 = vmax.f32 %v1209, %v1234
    %v1259 = vmax.f32 %v1210, %v1239
    %v1260 = vmax.f32 %v1211, %v1244
    %v1261 = vmax.f32 %v1212, %v1249
    %v1262 = vmax.f32 %v1213, %v1254
    %v1263 = vsub.f32 %v1206, %v1255
    %v1264 = vsub.f32 %v1207, %v1256
    %v1265 = vsub.f32 %v1208, %v1257
    %v1266 = vsub.f32 %v1209, %v1258
    %v1267 = vsub.f32 %v1210, %v1259
    %v1268 = vsub.f32 %v1211, %v1260
    %v1269 = vsub.f32 %v1212, %v1261
    %v1270 = vsub.f32 %v1213, %v1262
    %v1271 = vmul.f32 %v1263, 1.442695
    %v1272 = vpow.pop %v1271
    %v1273 = vmul.f32 %v1264, 1.442695
    %v1274 = vpow.pop %v1273
    %v1275 = vmul.f32 %v1265, 1.442695
    %v1276 = vpow.pop %v1275
    %v1277 = vmul.f32 %v1266, 1.442695
    %v1278 = vpow.pop %v1277
    %v1279 = vmul.f32 %v1267, 1.442695
    %v1280 = vpow.pop %v1279
    %v1281 = vmul.f32 %v1268, 1.442695
    %v1282 = vpow.pop %v1281
    %v1283 = vmul.f32 %v1269, 1.442695
    %v1284 = vpow.pop %v1283
    %v1285 = vmul.f32 %v1270, 1.442695
    %v1286 = vpow.pop %v1285
    %1288 = vset.pattern.permute.xlu0 0
    %1289 = vperm.xlu0 %1288, %v1255
    %v1290 = vpop.permute.xlu0 %1289
    %1293 = vset.pattern.permute.xlu0 0
    %1294 = vperm.xlu0 %1293, %v1256
    %v1295 = vpop.permute.xlu0 %1294
    %1298 = vset.pattern.permute.xlu0 0
    %1299 = vperm.xlu0 %1298, %v1257
    %v1300 = vpop.permute.xlu0 %1299
    %1303 = vset.pattern.permute.xlu0 0
    %1304 = vperm.xlu0 %1303, %v1258
    %v1305 = vpop.permute.xlu0 %1304
    %1308 = vset.pattern.permute.xlu0 0
    %1309 = vperm.xlu0 %1308, %v1259
    %v1310 = vpop.permute.xlu0 %1309
    %1313 = vset.pattern.permute.xlu0 0
    %1314 = vperm.xlu0 %1313, %v1260
    %v1315 = vpop.permute.xlu0 %1314
    %1318 = vset.pattern.permute.xlu0 0
    %1319 = vperm.xlu0 %1318, %v1261
    %v1320 = vpop.permute.xlu0 %1319
    %1323 = vset.pattern.permute.xlu0 0
    %1324 = vperm.xlu0 %1323, %v1262
    %v1325 = vpop.permute.xlu0 %1324
    %v1327 = vsub.f32 %v913, %v1290
    %v1328 = vsub.f32 %v915, %v1290
    %v1329 = vsub.f32 %v954, %v1295
    %v1330 = vsub.f32 %v956, %v1295
    %v1331 = vsub.f32 %v995, %v1300
    %v1332 = vsub.f32 %v997, %v1300
    %v1333 = vsub.f32 %v1036, %v1305
    %v1334 = vsub.f32 %v1038, %v1305
    %v1335 = vsub.f32 %v1077, %v1310
    %v1336 = vsub.f32 %v1079, %v1310
    %v1337 = vsub.f32 %v1118, %v1315
    %v1338 = vsub.f32 %v1120, %v1315
    %v1339 = vsub.f32 %v1159, %v1320
    %v1340 = vsub.f32 %v1161, %v1320
    %v1341 = vsub.f32 %v1200, %v1325
    %v1342 = vsub.f32 %v1202, %v1325
    %v1343 = vmul.f32 %v1327, 1.442695
    %v1344 = vpow.pop %v1343
    %v1345 = vmul.f32 %v1328, 1.442695
    %v1346 = vpow.pop %v1345
    %v1347 = vmul.f32 %v1329, 1.442695
    %v1348 = vpow.pop %v1347
    %v1349 = vmul.f32 %v1330, 1.442695
    %v1350 = vpow.pop %v1349
    %v1351 = vmul.f32 %v1331, 1.442695
    %v1352 = vpow.pop %v1351
    %v1353 = vmul.f32 %v1332, 1.442695
    %v1354 = vpow.pop %v1353
    %v1355 = vmul.f32 %v1333, 1.442695
    %v1356 = vpow.pop %v1355
    %v1357 = vmul.f32 %v1334, 1.442695
    %v1358 = vpow.pop %v1357
    %v1359 = vmul.f32 %v1335, 1.442695
    %v1360 = vpow.pop %v1359
    %v1361 = vmul.f32 %v1336, 1.442695
    %v1362 = vpow.pop %v1361
    %v1363 = vmul.f32 %v1337, 1.442695
    %v1364 = vpow.pop %v1363
    %v1365 = vmul.f32 %v1338, 1.442695
    %v1366 = vpow.pop %v1365
    %v1367 = vmul.f32 %v1339, 1.442695
    %v1368 = vpow.pop %v1367
    %v1369 = vmul.f32 %v1340, 1.442695
    %v1370 = vpow.pop %v1369
    %v1371 = vmul.f32 %v1341, 1.442695
    %v1372 = vpow.pop %v1371
    %v1373 = vmul.f32 %v1342, 1.442695
    %v1374 = vpow.pop %v1373
    %v1375 = vld [vmem:[#allocation3] sm:$0xf]
    %v1376 = vld [vmem:[#allocation3 + $0x4] sm:$0xf]
    %v1377 = vld [vmem:[#allocation3 + $0x8] sm:$0xf]
    %v1378 = vld [vmem:[#allocation3 + $0xc] sm:$0xf]
    %v1379 = vld [vmem:[#allocation3 + $0x10] sm:$0xf]
    %v1380 = vld [vmem:[#allocation3 + $0x14] sm:$0xf]
    %v1381 = vld [vmem:[#allocation3 + $0x18] sm:$0xf]
    %v1382 = vld [vmem:[#allocation3 + $0x1c] sm:$0xf]
    %v1383 = vmul.f32 %v1272, %v1375
    %v1384 = vmul.f32 %v1274, %v1376
    %v1385 = vmul.f32 %v1276, %v1377
    %v1386 = vmul.f32 %v1278, %v1378
    %v1387 = vmul.f32 %v1280, %v1379
    %v1388 = vmul.f32 %v1282, %v1380
    %v1389 = vmul.f32 %v1284, %v1381
    %v1390 = vmul.f32 %v1286, %v1382
    %v1391 = vsel %vm1214, %v1344, 0.0
    %v1392 = vsel %vm1214, %v1346, 0.0
    %v1393 = vadd.f32 %v1391, %v1392
    %1394 = vadd.xlane.f32.xlu0 %v1393
    %v1395 = vpop.xlane.xlu0 %1394
    %v1396 = vsel %vm1214, %v1348, 0.0
    %v1397 = vsel %vm1214, %v1350, 0.0
    %v1398 = vadd.f32 %v1396, %v1397
    %1399 = vadd.xlane.f32.xlu0 %v1398
    %v1400 = vpop.xlane.xlu0 %1399
    %v1401 = vsel %vm1214, %v1352, 0.0
    %v1402 = vsel %vm1214, %v1354, 0.0
    %v1403 = vadd.f32 %v1401, %v1402
    %1404 = vadd.xlane.f32.xlu0 %v1403
    %v1405 = vpop.xlane.xlu0 %1404
    %v1406 = vsel %vm1214, %v1356, 0.0
    %v1407 = vsel %vm1214, %v1358, 0.0
    %v1408 = vadd.f32 %v1406, %v1407
    %1409 = vadd.xlane.f32.xlu0 %v1408
    %v1410 = vpop.xlane.xlu0 %1409
    %v1411 = vsel %vm1214, %v1360, 0.0
    %v1412 = vsel %vm1214, %v1362, 0.0
    %v1413 = vadd.f32 %v1411, %v1412
    %1414 = vadd.xlane.f32.xlu0 %v1413
    %v1415 = vpop.xlane.xlu0 %1414
    %v1416 = vsel %vm1214, %v1364, 0.0
    %v1417 = vsel %vm1214, %v1366, 0.0
    %v1418 = vadd.f32 %v1416, %v1417
    %1419 = vadd.xlane.f32.xlu0 %v1418
    %v1420 = vpop.xlane.xlu0 %1419
    %v1421 = vsel %vm1214, %v1368, 0.0
    %v1422 = vsel %vm1214, %v1370, 0.0
    %v1423 = vadd.f32 %v1421, %v1422
    %1424 = vadd.xlane.f32.xlu0 %v1423
    %v1425 = vpop.xlane.xlu0 %1424
    %v1426 = vsel %vm1214, %v1372, 0.0
    %v1427 = vsel %vm1214, %v1374, 0.0
    %v1428 = vadd.f32 %v1426, %v1427
    %1429 = vadd.xlane.f32.xlu0 %v1428
    %v1430 = vpop.xlane.xlu0 %1429
    %v1431 = vadd.f32 %v1383, %v1395
    %v1432 = vadd.f32 %v1384, %v1400
    %v1433 = vadd.f32 %v1385, %v1405
    %v1434 = vadd.f32 %v1386, %v1410
    %v1435 = vadd.f32 %v1387, %v1415
    %v1436 = vadd.f32 %v1388, %v1420
    %v1437 = vadd.f32 %v1389, %v1425
    %v1438 = vadd.f32 %v1390, %v1430
    %vm1439 = vcmask 3072
    %1440 = vst.msk [vmem:[#allocation3] sm:$0xf] %vm1439, %v1431
    %1441 = vst.msk [vmem:[#allocation3 + $0x4] sm:$0xf] %vm1439, %v1432
    %1442 = vst.msk [vmem:[#allocation3 + $0x8] sm:$0xf] %vm1439, %v1433
    %1443 = vst.msk [vmem:[#allocation3 + $0xc] sm:$0xf] %vm1439, %v1434
    %1444 = vst.msk [vmem:[#allocation3 + $0x10] sm:$0xf] %vm1439, %v1435
    %1445 = vst.msk [vmem:[#allocation3 + $0x14] sm:$0xf] %vm1439, %v1436
    %1446 = vst.msk [vmem:[#allocation3 + $0x18] sm:$0xf] %vm1439, %v1437
    %1447 = vst.msk [vmem:[#allocation3 + $0x1c] sm:$0xf] %vm1439, %v1438
    %v1448 = vpack.c.bf16 %v1344, %v1344
    %v1449 = vpack.c.bf16 %v1346, %v1346
    %v1450 = vpack.c.bf16 %v1348, %v1348
    %v1451 = vpack.c.bf16 %v1350, %v1350
    %v1452 = vpack.c.bf16 %v1352, %v1352
    %v1453 = vpack.c.bf16 %v1354, %v1354
    %v1454 = vpack.c.bf16 %v1356, %v1356
    %v1455 = vpack.c.bf16 %v1358, %v1358
    %v1456 = vpack.c.bf16 %v1360, %v1360
    %v1457 = vpack.c.bf16 %v1362, %v1362
    %v1458 = vpack.c.bf16 %v1364, %v1364
    %v1459 = vpack.c.bf16 %v1366, %v1366
    %v1460 = vpack.c.bf16 %v1368, %v1368
    %v1461 = vpack.c.bf16 %v1370, %v1370
    %v1462 = vpack.c.bf16 %v1372, %v1372
    %v1463 = vpack.c.bf16 %v1374, %v1374
    %1464 = vmatprep.subr.bf16.mxu0 0
    %1465 = vmatpush1.bf16.msra.mxu0 %v750
    %1466 = vmatprep.subr.bf16.mxu0 0
    %1467 = vmatpush1.bf16.msra.mxu0 %v751
    %1468 = vmatprep.subr.bf16.mxu0 0
    %1469 = vmatpush1.bf16.msra.mxu0 %v752
    %1470 = vmatprep.subr.bf16.mxu0 0
    %1471 = vmatpush1.bf16.msra.mxu0 %v753
    %1472 = vmatprep.subr.bf16.mxu0 0
    %1473 = vmatpush1.bf16.msra.mxu0 %v754
    %1474 = vmatprep.subr.bf16.mxu0 0
    %1475 = vmatpush1.bf16.msra.mxu0 %v755
    %1476 = vmatprep.subr.bf16.mxu0 0
    %1477 = vmatpush1.bf16.msra.mxu0 %v756
    %1478 = vmatprep.subr.bf16.mxu0 0
    %1479 = vmatpush1.bf16.msra.mxu0 %v757
    %1480 = vmatprep.subr.bf16.mxu0 0
    %1481 = vmatpush1.bf16.msra.mxu0 %v758
    %1482 = vmatprep.subr.bf16.mxu0 0
    %1483 = vmatpush1.bf16.msra.mxu0 %v759
    %1484 = vmatprep.subr.bf16.mxu0 0
    %1485 = vmatpush1.bf16.msra.mxu0 %v760
    %1486 = vmatprep.subr.bf16.mxu0 0
    %1487 = vmatpush1.bf16.msra.mxu0 %v761
    %1488 = vmatprep.subr.bf16.mxu0 0
    %1489 = vmatpush1.bf16.msra.mxu0 %v762
    %1490 = vmatprep.subr.bf16.mxu0 0
    %1491 = vmatpush1.bf16.msra.mxu0 %v763
    %1492 = vmatprep.subr.bf16.mxu0 0
    %1493 = vmatpush1.bf16.msra.mxu0 %v764
    %1494 = vmatprep.subr.bf16.mxu0 0
    %1495 = vmatpush1.bf16.msra.mxu0 %v765
    %1496 = vmatprep.mubr.bf16.mxu0 %v1449
    %1497 = vmatmul.mubr.bf16.gmra.mrb[0].mxu0 %v1448
    %v1498 = vpop.f32.mrb[0].mxu0
    %v1499 = vadd.f32 0.0, %v1498
    %v1500 = vpop.f32.mrb[0].mxu0
    %v1501 = vpop.f32.mrb[0].mxu0
    %v1502 = vpop.f32.mrb[0].mxu0
    %1503 = vdwg.mxu0
    %1504 = vmatprep.subr.bf16.mxu0 0
    %1505 = vmatpush1.bf16.msra.mxu0 %v766
    %1506 = vmatprep.subr.bf16.mxu0 0
    %1507 = vmatpush1.bf16.msra.mxu0 %v767
    %1508 = vmatprep.subr.bf16.mxu0 0
    %1509 = vmatpush1.bf16.msra.mxu0 %v768
    %1510 = vmatprep.subr.bf16.mxu0 0
    %1511 = vmatpush1.bf16.msra.mxu0 %v769
    %1512 = vmatprep.subr.bf16.mxu0 0
    %1513 = vmatpush1.bf16.msra.mxu0 %v770
    %1514 = vmatprep.subr.bf16.mxu0 0
    %1515 = vmatpush1.bf16.msra.mxu0 %v771
    %1516 = vmatprep.subr.bf16.mxu0 0
    %1517 = vmatpush1.bf16.msra.mxu0 %v772
    %1518 = vmatprep.subr.bf16.mxu0 0
    %1519 = vmatpush1.bf16.msra.mxu0 %v773
    %1520 = vmatprep.subr.bf16.mxu0 0
    %1521 = vmatpush1.bf16.msra.mxu0 %v774
    %1522 = vmatprep.subr.bf16.mxu0 0
    %1523 = vmatpush1.bf16.msra.mxu0 %v775
    %1524 = vmatprep.subr.bf16.mxu0 0
    %1525 = vmatpush1.bf16.msra.mxu0 %v776
    %1526 = vmatprep.subr.bf16.mxu0 0
    %1527 = vmatpush1.bf16.msra.mxu0 %v777
    %1528 = vmatprep.subr.bf16.mxu0 0
    %1529 = vmatpush1.bf16.msra.mxu0 %v778
    %1530 = vmatprep.subr.bf16.mxu0 0
    %1531 = vmatpush1.bf16.msra.mxu0 %v779
    %1532 = vmatprep.subr.bf16.mxu0 0
    %1533 = vmatpush1.bf16.msra.mxu0 %v780
    %1534 = vmatprep.subr.bf16.mxu0 0
    %1535 = vmatpush1.bf16.msra.mxu0 %v781
    %1536 = vmatprep.mubr.bf16.mxu0 %v1451
    %1537 = vmatmul.mubr.bf16.gmra.mrb[0].mxu0 %v1450
    %v1538 = vpop.f32.mrb[0].mxu0
    %v1539 = vadd.f32 0.0, %v1538
    %v1540 = vpop.f32.mrb[0].mxu0
    %v1541 = vpop.f32.mrb[0].mxu0
    %v1542 = vpop.f32.mrb[0].mxu0
    %1543 = vdwg.mxu0
    %1544 = vmatprep.subr.bf16.mxu0 0
    %1545 = vmatpush1.bf16.msra.mxu0 %v782
    %1546 = vmatprep.subr.bf16.mxu0 0
    %1547 = vmatpush1.bf16.msra.mxu0 %v783
    %1548 = vmatprep.subr.bf16.mxu0 0
    %1549 = vmatpush1.bf16.msra.mxu0 %v784
    %1550 = vmatprep.subr.bf16.mxu0 0
    %1551 = vmatpush1.bf16.msra.mxu0 %v785
    %1552 = vmatprep.subr.bf16.mxu0 0
    %1553 = vmatpush1.bf16.msra.mxu0 %v786
    %1554 = vmatprep.subr.bf16.mxu0 0
    %1555 = vmatpush1.bf16.msra.mxu0 %v787
    %1556 = vmatprep.subr.bf16.mxu0 0
    %1557 = vmatpush1.bf16.msra.mxu0 %v788
    %1558 = vmatprep.subr.bf16.mxu0 0
    %1559 = vmatpush1.bf16.msra.mxu0 %v789
    %1560 = vmatprep.subr.bf16.mxu0 0
    %1561 = vmatpush1.bf16.msra.mxu0 %v790
    %1562 = vmatprep.subr.bf16.mxu0 0
    %1563 = vmatpush1.bf16.msra.mxu0 %v791
    %1564 = vmatprep.subr.bf16.mxu0 0
    %1565 = vmatpush1.bf16.msra.mxu0 %v792
    %1566 = vmatprep.subr.bf16.mxu0 0
    %1567 = vmatpush1.bf16.msra.mxu0 %v793
    %1568 = vmatprep.subr.bf16.mxu0 0
    %1569 = vmatpush1.bf16.msra.mxu0 %v794
    %1570 = vmatprep.subr.bf16.mxu0 0
    %1571 = vmatpush1.bf16.msra.mxu0 %v795
    %1572 = vmatprep.subr.bf16.mxu0 0
    %1573 = vmatpush1.bf16.msra.mxu0 %v796
    %1574 = vmatprep.subr.bf16.mxu0 0
    %1575 = vmatpush1.bf16.msra.mxu0 %v797
    %1576 = vmatprep.mubr.bf16.mxu0 %v1453
    %1577 = vmatmul.mubr.bf16.gmra.mrb[0].mxu0 %v1452
    %v1578 = vpop.f32.mrb[0].mxu0
    %v1579 = vadd.f32 0.0, %v1578
    %v1580 = vpop.f32.mrb[0].mxu0
    %v1581 = vpop.f32.mrb[0].mxu0
    %v1582 = vpop.f32.mrb[0].mxu0
    %1583 = vdwg.mxu0
    %1584 = vmatprep.subr.bf16.mxu0 0
    %1585 = vmatpush1.bf16.msra.mxu0 %v798
    %1586 = vmatprep.subr.bf16.mxu0 0
    %1587 = vmatpush1.bf16.msra.mxu0 %v799
    %1588 = vmatprep.subr.bf16.mxu0 0
    %1589 = vmatpush1.bf16.msra.mxu0 %v800
    %1590 = vmatprep.subr.bf16.mxu0 0
    %1591 = vmatpush1.bf16.msra.mxu0 %v801
    %1592 = vmatprep.subr.bf16.mxu0 0
    %1593 = vmatpush1.bf16.msra.mxu0 %v802
    %1594 = vmatprep.subr.bf16.mxu0 0
    %1595 = vmatpush1.bf16.msra.mxu0 %v803
    %1596 = vmatprep.subr.bf16.mxu0 0
    %1597 = vmatpush1.bf16.msra.mxu0 %v804
    %1598 = vmatprep.subr.bf16.mxu0 0
    %1599 = vmatpush1.bf16.msra.mxu0 %v805
    %1600 = vmatprep.subr.bf16.mxu0 0
    %1601 = vmatpush1.bf16.msra.mxu0 %v806
    %1602 = vmatprep.subr.bf16.mxu0 0
    %1603 = vmatpush1.bf16.msra.mxu0 %v807
    %1604 = vmatprep.subr.bf16.mxu0 0
    %1605 = vmatpush1.bf16.msra.mxu0 %v808
    %1606 = vmatprep.subr.bf16.mxu0 0
    %1607 = vmatpush1.bf16.msra.mxu0 %v809
    %1608 = vmatprep.subr.bf16.mxu0 0
    %1609 = vmatpush1.bf16.msra.mxu0 %v810
    %1610 = vmatprep.subr.bf16.mxu0 0
    %1611 = vmatpush1.bf16.msra.mxu0 %v811
    %1612 = vmatprep.subr.bf16.mxu0 0
    %1613 = vmatpush1.bf16.msra.mxu0 %v812
    %1614 = vmatprep.subr.bf16.mxu0 0
    %1615 = vmatpush1.bf16.msra.mxu0 %v813
    %1616 = vmatprep.mubr.bf16.mxu0 %v1455
    %1617 = vmatmul.mubr.bf16.gmra.mrb[0].mxu0 %v1454
    %v1618 = vpop.f32.mrb[0].mxu0
    %v1619 = vadd.f32 0.0, %v1618
    %v1620 = vpop.f32.mrb[0].mxu0
    %v1621 = vpop.f32.mrb[0].mxu0
    %v1622 = vpop.f32.mrb[0].mxu0
    %1623 = vdwg.mxu0
    %1624 = vmatprep.subr.bf16.mxu0 0
    %1625 = vmatpush1.bf16.msra.mxu0 %v814
    %1626 = vmatprep.subr.bf16.mxu0 0
    %1627 = vmatpush1.bf16.msra.mxu0 %v815
    %1628 = vmatprep.subr.bf16.mxu0 0
    %1629 = vmatpush1.bf16.msra.mxu0 %v816
    %1630 = vmatprep.subr.bf16.mxu0 0
    %1631 = vmatpush1.bf16.msra.mxu0 %v817
    %1632 = vmatprep.subr.bf16.mxu0 0
    %1633 = vmatpush1.bf16.msra.mxu0 %v818
    %1634 = vmatprep.subr.bf16.mxu0 0
    %1635 = vmatpush1.bf16.msra.mxu0 %v819
    %1636 = vmatprep.subr.bf16.mxu0 0
    %1637 = vmatpush1.bf16.msra.mxu0 %v820
    %1638 = vmatprep.subr.bf16.mxu0 0
    %1639 = vmatpush1.bf16.msra.mxu0 %v821
    %1640 = vmatprep.subr.bf16.mxu0 0
    %1641 = vmatpush1.bf16.msra.mxu0 %v822
    %1642 = vmatprep.subr.bf16.mxu0 0
    %1643 = vmatpush1.bf16.msra.mxu0 %v823
    %1644 = vmatprep.subr.bf16.mxu0 0
    %1645 = vmatpush1.bf16.msra.mxu0 %v824
    %1646 = vmatprep.subr.bf16.mxu0 0
    %1647 = vmatpush1.bf16.msra.mxu0 %v825
    %1648 = vmatprep.subr.bf16.mxu0 0
    %1649 = vmatpush1.bf16.msra.mxu0 %v826
    %1650 = vmatprep.subr.bf16.mxu0 0
    %1651 = vmatpush1.bf16.msra.mxu0 %v827
    %1652 = vmatprep.subr.bf16.mxu0 0
    %1653 = vmatpush1.bf16.msra.mxu0 %v828
    %1654 = vmatprep.subr.bf16.mxu0 0
    %1655 = vmatpush1.bf16.msra.mxu0 %v829
    %1656 = vmatprep.mubr.bf16.mxu0 %v1457
    %1657 = vmatmul.mubr.bf16.gmra.mrb[0].mxu0 %v1456
    %v1658 = vpop.f32.mrb[0].mxu0
    %v1659 = vadd.f32 0.0, %v1658
    %v1660 = vpop.f32.mrb[0].mxu0
    %v1661 = vpop.f32.mrb[0].mxu0
    %v1662 = vpop.f32.mrb[0].mxu0
    %1663 = vdwg.mxu0
    %1664 = vmatprep.subr.bf16.mxu0 0
    %1665 = vmatpush1.bf16.msra.mxu0 %v830
    %1666 = vmatprep.subr.bf16.mxu0 0
    %1667 = vmatpush1.bf16.msra.mxu0 %v831
    %1668 = vmatprep.subr.bf16.mxu0 0
    %1669 = vmatpush1.bf16.msra.mxu0 %v832
    %1670 = vmatprep.subr.bf16.mxu0 0
    %1671 = vmatpush1.bf16.msra.mxu0 %v833
    %1672 = vmatprep.subr.bf16.mxu0 0
    %1673 = vmatpush1.bf16.msra.mxu0 %v834
    %1674 = vmatprep.subr.bf16.mxu0 0
    %1675 = vmatpush1.bf16.msra.mxu0 %v835
    %1676 = vmatprep.subr.bf16.mxu0 0
    %1677 = vmatpush1.bf16.msra.mxu0 %v836
    %1678 = vmatprep.subr.bf16.mxu0 0
    %1679 = vmatpush1.bf16.msra.mxu0 %v837
    %1680 = vmatprep.subr.bf16.mxu0 0
    %1681 = vmatpush1.bf16.msra.mxu0 %v838
    %1682 = vmatprep.subr.bf16.mxu0 0
    %1683 = vmatpush1.bf16.msra.mxu0 %v839
    %1684 = vmatprep.subr.bf16.mxu0 0
    %1685 = vmatpush1.bf16.msra.mxu0 %v840
    %1686 = vmatprep.subr.bf16.mxu0 0
    %1687 = vmatpush1.bf16.msra.mxu0 %v841
    %1688 = vmatprep.subr.bf16.mxu0 0
    %1689 = vmatpush1.bf16.msra.mxu0 %v842
    %1690 = vmatprep.subr.bf16.mxu0 0
    %1691 = vmatpush1.bf16.msra.mxu0 %v843
    %1692 = vmatprep.subr.bf16.mxu0 0
    %1693 = vmatpush1.bf16.msra.mxu0 %v844
    %1694 = vmatprep.subr.bf16.mxu0 0
    %1695 = vmatpush1.bf16.msra.mxu0 %v845
    %1696 = vmatprep.mubr.bf16.mxu0 %v1459
    %1697 = vmatmul.mubr.bf16.gmra.mrb[0].mxu0 %v1458
    %v1698 = vpop.f32.mrb[0].mxu0
    %v1699 = vadd.f32 0.0, %v1698
    %v1700 = vpop.f32.mrb[0].mxu0
    %v1701 = vpop.f32.mrb[0].mxu0
    %v1702 = vpop.f32.mrb[0].mxu0
    %1703 = vdwg.mxu0
    %1704 = vmatprep.subr.bf16.mxu0 0
    %1705 = vmatpush1.bf16.msra.mxu0 %v846
    %1706 = vmatprep.subr.bf16.mxu0 0
    %1707 = vmatpush1.bf16.msra.mxu0 %v847
    %1708 = vmatprep.subr.bf16.mxu0 0
    %1709 = vmatpush1.bf16.msra.mxu0 %v848
    %1710 = vmatprep.subr.bf16.mxu0 0
    %1711 = vmatpush1.bf16.msra.mxu0 %v849
    %1712 = vmatprep.subr.bf16.mxu0 0
    %1713 = vmatpush1.bf16.msra.mxu0 %v850
    %1714 = vmatprep.subr.bf16.mxu0 0
    %1715 = vmatpush1.bf16.msra.mxu0 %v851
    %1716 = vmatprep.subr.bf16.mxu0 0
    %1717 = vmatpush1.bf16.msra.mxu0 %v852
    %1718 = vmatprep.subr.bf16.mxu0 0
    %1719 = vmatpush1.bf16.msra.mxu0 %v853
    %1720 = vmatprep.subr.bf16.mxu0 0
    %1721 = vmatpush1.bf16.msra.mxu0 %v854
    %1722 = vmatprep.subr.bf16.mxu0 0
    %1723 = vmatpush1.bf16.msra.mxu0 %v855
    %1724 = vmatprep.subr.bf16.mxu0 0
    %1725 = vmatpush1.bf16.msra.mxu0 %v856
    %1726 = vmatprep.subr.bf16.mxu0 0
    %1727 = vmatpush1.bf16.msra.mxu0 %v857
    %1728 = vmatprep.subr.bf16.mxu0 0
    %1729 = vmatpush1.bf16.msra.mxu0 %v858
    %1730 = vmatprep.subr.bf16.mxu0 0
    %1731 = vmatpush1.bf16.msra.mxu0 %v859
    %1732 = vmatprep.subr.bf16.mxu0 0
    %1733 = vmatpush1.bf16.msra.mxu0 %v860
    %1734 = vmatprep.subr.bf16.mxu0 0
    %1735 = vmatpush1.bf16.msra.mxu0 %v861
    %1736 = vmatprep.mubr.bf16.mxu0 %v1461
    %1737 = vmatmul.mubr.bf16.gmra.mrb[0].mxu0 %v1460
    %v1738 = vpop.f32.mrb[0].mxu0
    %v1739 = vadd.f32 0.0, %v1738
    %v1740 = vpop.f32.mrb[0].mxu0
    %v1741 = vpop.f32.mrb[0].mxu0
    %v1742 = vpop.f32.mrb[0].mxu0
    %1743 = vdwg.mxu0
    %1744 = vmatprep.subr.bf16.mxu0 0
    %1745 = vmatpush1.bf16.msra.mxu0 %v862
    %1746 = vmatprep.subr.bf16.mxu0 0
    %1747 = vmatpush1.bf16.msra.mxu0 %v863
    %1748 = vmatprep.subr.bf16.mxu0 0
    %1749 = vmatpush1.bf16.msra.mxu0 %v864
    %1750 = vmatprep.subr.bf16.mxu0 0
    %1751 = vmatpush1.bf16.msra.mxu0 %v865
    %1752 = vmatprep.subr.bf16.mxu0 0
    %1753 = vmatpush1.bf16.msra.mxu0 %v866
    %1754 = vmatprep.subr.bf16.mxu0 0
    %1755 = vmatpush1.bf16.msra.mxu0 %v867
    %1756 = vmatprep.subr.bf16.mxu0 0
    %1757 = vmatpush1.bf16.msra.mxu0 %v868
    %1758 = vmatprep.subr.bf16.mxu0 0
    %1759 = vmatpush1.bf16.msra.mxu0 %v869
    %1760 = vmatprep.subr.bf16.mxu0 0
    %1761 = vmatpush1.bf16.msra.mxu0 %v870
    %1762 = vmatprep.subr.bf16.mxu0 0
    %1763 = vmatpush1.bf16.msra.mxu0 %v871
    %1764 = vmatprep.subr.bf16.mxu0 0
    %1765 = vmatpush1.bf16.msra.mxu0 %v872
    %1766 = vmatprep.subr.bf16.mxu0 0
    %1767 = vmatpush1.bf16.msra.mxu0 %v873
    %1768 = vmatprep.subr.bf16.mxu0 0
    %1769 = vmatpush1.bf16.msra.mxu0 %v874
    %1770 = vmatprep.subr.bf16.mxu0 0
    %1771 = vmatpush1.bf16.msra.mxu0 %v875
    %1772 = vmatprep.subr.bf16.mxu0 0
    %1773 = vmatpush1.bf16.msra.mxu0 %v876
    %1774 = vmatprep.subr.bf16.mxu0 0
    %1775 = vmatpush1.bf16.msra.mxu0 %v877
    %1776 = vmatprep.mubr.bf16.mxu0 %v1463
    %1777 = vmatmul.mubr.bf16.gmra.mrb[0].mxu0 %v1462
    %v1778 = vpop.f32.mrb[0].mxu0
    %v1779 = vadd.f32 0.0, %v1778
    %v1780 = vpop.f32.mrb[0].mxu0
    %v1781 = vpop.f32.mrb[0].mxu0
    %v1782 = vpop.f32.mrb[0].mxu0
    %1783 = vdwg.mxu0
    %v1784 = vld [vmem:[#allocation4] sm:$0xf]
    %v1785 = vld [vmem:[#allocation4 + $0x4] sm:$0xf]
    %v1786 = vld [vmem:[#allocation4 + $0x8] sm:$0xf]
    %v1787 = vld [vmem:[#allocation4 + $0xc] sm:$0xf]
    %v1788 = vld [vmem:[#allocation4 + $0x10] sm:$0xf]
    %v1789 = vld [vmem:[#allocation4 + $0x14] sm:$0xf]
    %v1790 = vld [vmem:[#allocation4 + $0x18] sm:$0xf]
    %v1791 = vld [vmem:[#allocation4 + $0x1c] sm:$0xf]
    %1793 = vset.pattern.permute.xlu0 0
    %1794 = vperm.xlu0 %1793, %v1272
    %v1795 = vpop.permute.xlu0 %1794
    %1798 = vset.pattern.permute.xlu0 0
    %1799 = vperm.xlu0 %1798, %v1274
    %v1800 = vpop.permute.xlu0 %1799
    %1803 = vset.pattern.permute.xlu0 0
    %1804 = vperm.xlu0 %1803, %v1276
    %v1805 = vpop.permute.xlu0 %1804
    %1808 = vset.pattern.permute.xlu0 0
    %1809 = vperm.xlu0 %1808, %v1278
    %v1810 = vpop.permute.xlu0 %1809
    %1813 = vset.pattern.permute.xlu0 0
    %1814 = vperm.xlu0 %1813, %v1280
    %v1815 = vpop.permute.xlu0 %1814
    %1818 = vset.pattern.permute.xlu0 0
    %1819 = vperm.xlu0 %1818, %v1282
    %v1820 = vpop.permute.xlu0 %1819
    %1823 = vset.pattern.permute.xlu0 0
    %1824 = vperm.xlu0 %1823, %v1284
    %v1825 = vpop.permute.xlu0 %1824
    %1828 = vset.pattern.permute.xlu0 0
    %1829 = vperm.xlu0 %1828, %v1286
    %v1830 = vpop.permute.xlu0 %1829
    %v1832 = vmul.f32 %v1795, %v1784
    %v1833 = vmul.f32 %v1800, %v1785
    %v1834 = vmul.f32 %v1805, %v1786
    %v1835 = vmul.f32 %v1810, %v1787
    %v1836 = vmul.f32 %v1815, %v1788
    %v1837 = vmul.f32 %v1820, %v1789
    %v1838 = vmul.f32 %v1825, %v1790
    %v1839 = vmul.f32 %v1830, %v1791
    %v1840 = vadd.f32 %v1832, %v1499
    %v1841 = vadd.f32 %v1833, %v1539
    %v1842 = vadd.f32 %v1834, %v1579
    %v1843 = vadd.f32 %v1835, %v1619
    %v1844 = vadd.f32 %v1836, %v1659
    %v1845 = vadd.f32 %v1837, %v1699
    %v1846 = vadd.f32 %v1838, %v1739
    %v1847 = vadd.f32 %v1839, %v1779
    %1848 = vst [vmem:[#allocation4] sm:$0xf] %v1840
    %1849 = vst [vmem:[#allocation4 + $0x4] sm:$0xf] %v1841
    %1850 = vst [vmem:[#allocation4 + $0x8] sm:$0xf] %v1842
    %1851 = vst [vmem:[#allocation4 + $0xc] sm:$0xf] %v1843
    %1852 = vst [vmem:[#allocation4 + $0x10] sm:$0xf] %v1844
    %1853 = vst [vmem:[#allocation4 + $0x14] sm:$0xf] %v1845
    %1854 = vst [vmem:[#allocation4 + $0x18] sm:$0xf] %v1846
    %1855 = vst [vmem:[#allocation4 + $0x1c] sm:$0xf] %v1847
    %1856 = vst.msk [vmem:[#allocation2] sm:$0xf] %vm1439, %v1255
    %1857 = vst.msk [vmem:[#allocation2 + $0x4] sm:$0xf] %vm1439, %v1256
    %1858 = vst.msk [vmem:[#allocation2 + $0x8] sm:$0xf] %vm1439, %v1257
    %1859 = vst.msk [vmem:[#allocation2 + $0xc] sm:$0xf] %vm1439, %v1258
    %1860 = vst.msk [vmem:[#allocation2 + $0x10] sm:$0xf] %vm1439, %v1259
    %1861 = vst.msk [vmem:[#allocation2 + $0x14] sm:$0xf] %vm1439, %v1260
    %1862 = vst.msk [vmem:[#allocation2 + $0x18] sm:$0xf] %vm1439, %v1261
    %1863 = vst.msk [vmem:[#allocation2 + $0x1c] sm:$0xf] %vm1439, %v1262
    // Predicated region
    $region30: #{tpu_custom_call.1} parent=1 // pred_check
      %p1864 = pneg %p57
    $region31: #{tpu_custom_call.1} parent=1 // pred_check_branch
      %1866 = sbr.rel (%p1864) target = $region33
    $region32: #{tpu_custom_call.1} parent=1 // pred_region
      %v1867 = vld [vmem:[#allocation3] sm:$0xf]
      %v1868 = vld [vmem:[#allocation3 + $0x4] sm:$0xf]
      %v1869 = vld [vmem:[#allocation3 + $0x8] sm:$0xf]
      %v1870 = vld [vmem:[#allocation3 + $0xc] sm:$0xf]
      %v1871 = vld [vmem:[#allocation3 + $0x10] sm:$0xf]
      %v1872 = vld [vmem:[#allocation3 + $0x14] sm:$0xf]
      %v1873 = vld [vmem:[#allocation3 + $0x18] sm:$0xf]
      %v1874 = vld [vmem:[#allocation3 + $0x1c] sm:$0xf]
      %v1875 = vrcp.pop %v1867
      %v1876 = vrcp.pop %v1868
      %v1877 = vrcp.pop %v1869
      %v1878 = vrcp.pop %v1870
      %v1879 = vrcp.pop %v1871
      %v1880 = vrcp.pop %v1872
      %v1881 = vrcp.pop %v1873
      %v1882 = vrcp.pop %v1874
      %v1883 = vld [vmem:[#allocation4] sm:$0xf]
      %v1884 = vld [vmem:[#allocation4 + $0x4] sm:$0xf]
      %v1885 = vld [vmem:[#allocation4 + $0x8] sm:$0xf]
      %v1886 = vld [vmem:[#allocation4 + $0xc] sm:$0xf]
      %v1887 = vld [vmem:[#allocation4 + $0x10] sm:$0xf]
      %v1888 = vld [vmem:[#allocation4 + $0x14] sm:$0xf]
      %v1889 = vld [vmem:[#allocation4 + $0x18] sm:$0xf]
      %v1890 = vld [vmem:[#allocation4 + $0x1c] sm:$0xf]
      %1892 = vset.pattern.permute.xlu0 0
      %1893 = vperm.xlu0 %1892, %v1875
      %v1894 = vpop.permute.xlu0 %1893
      %1897 = vset.pattern.permute.xlu0 0
      %1898 = vperm.xlu0 %1897, %v1876
      %v1899 = vpop.permute.xlu0 %1898
      %1902 = vset.pattern.permute.xlu0 0
      %1903 = vperm.xlu0 %1902, %v1877
      %v1904 = vpop.permute.xlu0 %1903
      %1907 = vset.pattern.permute.xlu0 0
      %1908 = vperm.xlu0 %1907, %v1878
      %v1909 = vpop.permute.xlu0 %1908
      %1912 = vset.pattern.permute.xlu0 0
      %1913 = vperm.xlu0 %1912, %v1879
      %v1914 = vpop.permute.xlu0 %1913
      %1917 = vset.pattern.permute.xlu0 0
      %1918 = vperm.xlu0 %1917, %v1880
      %v1919 = vpop.permute.xlu0 %1918
      %1922 = vset.pattern.permute.xlu0 0
      %1923 = vperm.xlu0 %1922, %v1881
      %v1924 = vpop.permute.xlu0 %1923
      %1927 = vset.pattern.permute.xlu0 0
      %1928 = vperm.xlu0 %1927, %v1882
      %v1929 = vpop.permute.xlu0 %1928
      %v1931 = vmul.f32 %v1883, %v1894
      %v1932 = vmul.f32 %v1884, %v1899
      %v1933 = vmul.f32 %v1885, %v1904
      %v1934 = vmul.f32 %v1886, %v1909
      %v1935 = vmul.f32 %v1887, %v1914
      %v1936 = vmul.f32 %v1888, %v1919
      %v1937 = vmul.f32 %v1889, %v1924
      %v1938 = vmul.f32 %v1890, %v1929
      %1939 = vst [vmem:[#allocation11] sm:$0xf] %v1931
      %1940 = vst [vmem:[#allocation11 + $0x4] sm:$0xf] %v1932
      %1941 = vst [vmem:[#allocation11 + $0x8] sm:$0xf] %v1933
      %1942 = vst [vmem:[#allocation11 + $0xc] sm:$0xf] %v1934
      %1943 = vst [vmem:[#allocation11 + $0x10] sm:$0xf] %v1935
      %1944 = vst [vmem:[#allocation11 + $0x14] sm:$0xf] %v1936
      %1945 = vst [vmem:[#allocation11 + $0x18] sm:$0xf] %v1937
      %1946 = vst [vmem:[#allocation11 + $0x1c] sm:$0xf] %v1938
    $region33: #{tpu_custom_call.1} parent=1 // pred_fallthru
      _
    // Predicated region
    $region34: #{tpu_custom_call.1} parent=1 // pred_check
      _
    $region35: #{tpu_custom_call.1} parent=1 // pred_check_branch
      %1948 = sbr.rel (0) target = $region37
    $region36: #{tpu_custom_call.1} parent=1 // pred_region
      %s1950 = ssub.s32 512, 512
      %1951 = vsyncadd [#allocation7], %s1950
      %s1952 = sshll.u32 [#allocation11], 4
      %s1953 = int_to_ptr.vmem [resolvable:$true] %s1952
      %1958 = dma.vmem_to_hbm [thread:$0]  %s1953, 512, %s3, [#allocation7], 64, 64, 4
    $region37: #{tpu_custom_call.1} parent=1 // pred_fallthru
      _
    // Predicated region
    $region38: #{tpu_custom_call.1} parent=1 // pred_check
      _
    $region39: #{tpu_custom_call.1} parent=1 // pred_check_branch
      %1960 = sbr.rel (0) target = $region41
    $region40: #{tpu_custom_call.1} parent=1 // pred_region
      %1961 = dma.done [#allocation7], 512
    $region41: #{tpu_custom_call.1} parent=1 // pred_fallthru
      _
    %1962 = vsyncpa [#allocation6], 1
    %1963 = vsyncpa [#allocation9], 1
    %1964 = vsyncpa [#allocation7], 1

</llo_original>
